<compile_context>
chip_gen: v7x
topology: tpu7x:2x2x1
jax: 0.10.0
libtpu: 0.0.40
codegen_flags: <defaults>
</compile_context>

<pallas_src>
import jax
import jax.numpy as jnp
from jax import lax
from jax.experimental import pallas as pl
from jax.experimental.pallas import tpu as pltpu


def _round_up(x, m):
    return (x + m - 1) // m * m


def encoder_gru_kernel(tok_ref, emb_ref, h0_ref, w_ih_ref, w_hh_ref,
                       b_ih_ref, b_hh_ref, out_ref, x_scr, gi_scr):
    """Whole-sequence GRU encoder in one kernel invocation.

    Gate order [r, z, n], b_hn kept inside the r*(...) term — torch.nn.GRU cell.
    """
    T = tok_ref.shape[0]            # static sequence length
    Hp = h0_ref.shape[-1]           # lane-padded hidden size

    # Zero the (padded) output block and gather scratch once.
    out_ref[...] = jnp.zeros_like(out_ref)
    x_scr[...] = jnp.zeros_like(x_scr)

    # 1) Gather all embedded tokens into (Tp, Hp) scratch; table is VMEM-resident.
    def gather(t, carry):
        x_scr[pl.ds(t, 1), :] = emb_ref[pl.ds(tok_ref[t], 1), :]
        return carry

    lax.fori_loop(0, T, gather, 0, unroll=True)

    # 2) Hoisted input projection: one batched MXU matmul for every time step.
    gi_scr[...] = jnp.dot(x_scr[...], w_ih_ref[...],
                          preferred_element_type=jnp.float32) + b_ih_ref[...]

    # 3) Serial recurrence: only h @ W_hh remains on the critical path.
    def step(t, h):
        gi = gi_scr[pl.ds(t, 1), :]                                   # (1, 3Hp)
        gh = jnp.dot(h, w_hh_ref[...],
                     preferred_element_type=jnp.float32) + b_hh_ref[...]
        r = jax.nn.sigmoid(gi[:, 0:Hp] + gh[:, 0:Hp])
        z = jax.nn.sigmoid(gi[:, Hp:2 * Hp] + gh[:, Hp:2 * Hp])
        n = jnp.tanh(gi[:, 2 * Hp:3 * Hp] + r * gh[:, 2 * Hp:3 * Hp])
        h_new = (1.0 - z) * n + z * h
        out_ref[pl.ds(t, 1), :] = h_new          # VMEM-resident; single writeback
        return h_new

    lax.fori_loop(0, T, step, h0_ref[...], unroll=True)


def _pad_gate_weight(w, H, Hp):
    # (H, 3H) -> (Hp, 3*Hp); each gate block lane-aligned at multiples of Hp.
    w3 = w.reshape(H, 3, H)
    w3 = jnp.pad(w3, ((0, Hp - H), (0, 0), (0, Hp - H)))
    return w3.reshape(Hp, 3 * Hp)


def _pad_gate_bias(b, H, Hp):
    b3 = b.reshape(3, H)
    b3 = jnp.pad(b3, ((0, 0), (0, Hp - H)))
    return b3.reshape(1, 3 * Hp)


def encoder_rnn_sequence(tokens, hidden0, params):
    """Run the EncoderRNN over a whole token sequence in one pallas_call.

    tokens:  (T,) int32 token ids (T >= 1)
    hidden0: (1, 1, H) float32 initial hidden
    returns (outputs (T, 1, H), hidden (1, 1, H)) — identical to calling
    EncoderRNN.forward once per token and stacking the outputs.
    """
    emb = params["embedding"]                  # (V, H)
    V, H = emb.shape
    Hp = _round_up(H, 128)
    T = int(tokens.shape[0])
    Tp = _round_up(T, 8)

    # Lane-pad parameters (zero padding keeps the first-H-lane math exact).
    emb_p = jnp.pad(emb.astype(jnp.float32), ((0, 0), (0, Hp - H)))
    w_ih_p = _pad_gate_weight(params["w_ih"].astype(jnp.float32), H, Hp)
    w_hh_p = _pad_gate_weight(params["w_hh"].astype(jnp.float32), H, Hp)
    b_ih_p = _pad_gate_bias(params["b_ih"].astype(jnp.float32), H, Hp)
    b_hh_p = _pad_gate_bias(params["b_hh"].astype(jnp.float32), H, Hp)
    h0_p = jnp.pad(hidden0.reshape(1, H).astype(jnp.float32),
                   ((0, 0), (0, Hp - H)))

    toks = jnp.clip(tokens.astype(jnp.int32), 0, V - 1)   # host-side OOB guard

    vmem = pltpu.MemorySpace.VMEM
    outs = pl.pallas_call(
        encoder_gru_kernel,
        out_shape=jax.ShapeDtypeStruct((Tp, Hp), jnp.float32),
        in_specs=[
            pl.BlockSpec(memory_space=pltpu.MemorySpace.SMEM),   # token ids
            pl.BlockSpec(memory_space=vmem),                     # embedding table (V, Hp)
            pl.BlockSpec(memory_space=vmem),                     # h0 (1, Hp)
            pl.BlockSpec(memory_space=vmem),                     # W_ih (Hp, 3Hp)
            pl.BlockSpec(memory_space=vmem),                     # W_hh (Hp, 3Hp)
            pl.BlockSpec(memory_space=vmem),                     # b_ih (1, 3Hp)
            pl.BlockSpec(memory_space=vmem),                     # b_hh (1, 3Hp)
        ],
        out_specs=pl.BlockSpec(memory_space=vmem),
        scratch_shapes=[
            pltpu.VMEM((Tp, Hp), jnp.float32),        # gathered embeddings X
            pltpu.VMEM((Tp, 3 * Hp), jnp.float32),    # precomputed X @ W_ih + b_ih
        ],
    )(toks, emb_p, h0_p, w_ih_p, w_hh_p, b_ih_p, b_hh_p)

    outputs = outs[:T, :H].reshape(T, 1, H)
    hidden = outs[T - 1, :H].reshape(1, 1, H)   # single-layer GRU: output == hidden
    return outputs, hidden


def encoder_rnn_forward(token, hidden, params):
    """Single-step EncoderRNN.forward(input, hidden): a 1-token sequence."""
    H = params["embedding"].shape[1]
    tok = jnp.asarray(token, jnp.int32).reshape(1)
    outputs, h_new = encoder_rnn_sequence(tok, hidden, params)
    return outputs.reshape(1, 1, H), h_new


# ----------------------------- pure-JAX references -----------------------------

def ref_forward(token, hidden, params):
    emb = params["embedding"]
    H = emb.shape[1]
    x = emb[token].reshape(1, H)
    h = hidden.reshape(1, H)
    gi = x @ params["w_ih"] + params["b_ih"]
    gh = h @ params["w_hh"] + params["b_hh"]
    r = jax.nn.sigmoid(gi[:, :H] + gh[:, :H])
    z = jax.nn.sigmoid(gi[:, H:2 * H] + gh[:, H:2 * H])
    n = jnp.tanh(gi[:, 2 * H:] + r * gh[:, 2 * H:])
    h_new = (1.0 - z) * n + z * h
    return h_new.reshape(1, 1, H), h_new.reshape(1, 1, H)


def ref_sequence(tokens, hidden0, params):
    emb = params["embedding"]
    H = emb.shape[1]
    w_ih, w_hh = params["w_ih"], params["w_hh"]
    b_ih, b_hh = params["b_ih"], params["b_hh"]

    def step(h, tok):
        x = emb[tok].reshape(1, H)
        gi = x @ w_ih + b_ih
        gh = h @ w_hh + b_hh
        r = jax.nn.sigmoid(gi[:, :H] + gh[:, :H])
        z = jax.nn.sigmoid(gi[:, H:2 * H] + gh[:, H:2 * H])
        n = jnp.tanh(gi[:, 2 * H:] + r * gh[:, 2 * H:])
        h_new = (1.0 - z) * n + z * h
        return h_new, h_new[0]

    h0 = hidden0.reshape(1, H)
    h_final, outs = jax.lax.scan(step, h0, tokens)
    return outs.reshape(-1, 1, H), h_final.reshape(1, 1, H)


def init_params(key, input_size, hidden_size):
    """Deterministic init mirroring nn.Embedding / nn.GRU parameter shapes."""
    k_emb, k_wi, k_wh, k_bi, k_bh = jax.random.split(key, 5)
    bound = 1.0 / jnp.sqrt(hidden_size)
    return {
        # nn.Embedding(input_size, hidden_size): N(0, 1)
        "embedding": jax.random.normal(k_emb, (input_size, hidden_size), jnp.float32),
        # nn.GRU weights stored transposed as (H, 3H) for x @ W; gate order [r, z, n]
        "w_ih": jax.random.uniform(k_wi, (hidden_size, 3 * hidden_size),
                                   jnp.float32, -bound, bound),
        "w_hh": jax.random.uniform(k_wh, (hidden_size, 3 * hidden_size),
                                   jnp.float32, -bound, bound),
        "b_ih": jax.random.uniform(k_bi, (3 * hidden_size,), jnp.float32, -bound, bound),
        "b_hh": jax.random.uniform(k_bh, (3 * hidden_size,), jnp.float32, -bound, bound),
    }


if __name__ == "__main__":
    input_size = 16      # vocab size
    hidden_size = 32
    seq_len = 8

    key = jax.random.PRNGKey(0)
    params = init_params(key, input_size, hidden_size)

    tokens = jax.random.randint(jax.random.fold_in(key, 1), (seq_len,),
                                0, input_size, jnp.int32)
    hidden0 = jnp.zeros((1, 1, hidden_size), jnp.float32)      # initHidden()

    # Whole-sequence encoder: one pallas_call, time loop inside the kernel.
    outputs, h_final = encoder_rnn_sequence(tokens, hidden0, params)
    outputs, h_final = jax.block_until_ready((outputs, h_final))

    ref_outputs, ref_h = ref_sequence(tokens, hidden0, params)
    assert outputs.shape == (seq_len, 1, hidden_size)
    assert h_final.shape == (1, 1, hidden_size)
    assert jnp.allclose(outputs, ref_outputs, atol=1e-4, rtol=1e-4)
    assert jnp.allclose(h_final, ref_h, atol=1e-4, rtol=1e-4)

    # Single-step forward (exact EncoderRNN.forward semantics).
    out1, h1 = encoder_rnn_forward(tokens[0], hidden0, params)
    out1, h1 = jax.block_until_ready((out1, h1))
    r_out1, r_h1 = ref_forward(tokens[0], hidden0, params)
    assert out1.shape == (1, 1, hidden_size) and h1.shape == (1, 1, hidden_size)
    assert jnp.allclose(out1, r_out1, atol=1e-5, rtol=1e-5)
    assert jnp.allclose(h1, r_h1, atol=1e-5, rtol=1e-5)

    print("KERNEL_OK")
</pallas_src>

<mosaic_0001>
module attributes {stable_mosaic.version = 11 : i64} {
  func.func @encoder_gru_kernel(%arg0: memref<8xi32, #tpu.memory_space<smem>>, %arg1: memref<16x128xf32, #tpu.memory_space<vmem>>, %arg2: memref<1x128xf32, #tpu.memory_space<vmem>>, %arg3: memref<128x384xf32, #tpu.memory_space<vmem>>, %arg4: memref<128x384xf32, #tpu.memory_space<vmem>>, %arg5: memref<1x384xf32, #tpu.memory_space<vmem>>, %arg6: memref<1x384xf32, #tpu.memory_space<vmem>>, %arg7: memref<8x128xf32, #tpu.memory_space<vmem>>, %arg8: memref<8x128xf32, #tpu.memory_space<vmem>>, %arg9: memref<8x384xf32, #tpu.memory_space<vmem>>) attributes {dimension_semantics = [], scalar_prefetch = 0 : i64, scratch_operands = 2 : i64, tpu.core_type = #tpu.core_type<tc>} {
    %cst = arith.constant 0.000000e+00 : f32
    %0 = vector.broadcast %cst : f32 to vector<8x128xf32>
    %c0 = arith.constant 0 : index
    %c0_0 = arith.constant 0 : index
    %1 = vector.load %arg7[%c0, %c0_0] : memref<8x128xf32, #tpu.memory_space<vmem>>, vector<8x128xf32>
    tpu.vector_store %arg7[%c0, %c0_0], %0 {strides = array<i32>} : memref<8x128xf32, #tpu.memory_space<vmem>>, vector<8x128xf32>,
    %cst_1 = arith.constant 0.000000e+00 : f32
    %2 = vector.broadcast %cst_1 : f32 to vector<8x128xf32>
    %c0_2 = arith.constant 0 : index
    %c0_3 = arith.constant 0 : index
    %3 = vector.load %arg8[%c0_2, %c0_3] : memref<8x128xf32, #tpu.memory_space<vmem>>, vector<8x128xf32>
    tpu.vector_store %arg8[%c0_2, %c0_3], %2 {strides = array<i32>} : memref<8x128xf32, #tpu.memory_space<vmem>>, vector<8x128xf32>,
    %c0_i32 = arith.constant 0 : i32
    %4 = arith.index_cast %c0_i32 : i32 to index
    %5 = memref.load %arg0[%4] : memref<8xi32, #tpu.memory_space<smem>>
    %6 = arith.index_cast %5 : i32 to index
    %c0_4 = arith.constant 0 : index
    %7 = vector.load %arg1[%6, %c0_4] : memref<16x128xf32, #tpu.memory_space<vmem>>, vector<1x128xf32>
    %8 = arith.index_cast %c0_i32 : i32 to index
    %c0_5 = arith.constant 0 : index
    %9 = vector.load %arg8[%8, %c0_5] : memref<8x128xf32, #tpu.memory_space<vmem>>, vector<1x128xf32>
    tpu.vector_store %arg8[%8, %c0_5], %7 {strides = array<i32>} : memref<8x128xf32, #tpu.memory_space<vmem>>, vector<1x128xf32>,
    %c1_i32 = arith.constant 1 : i32
    %10 = arith.index_cast %c1_i32 : i32 to index
    %11 = memref.load %arg0[%10] : memref<8xi32, #tpu.memory_space<smem>>
    %12 = arith.index_cast %11 : i32 to index
    %c0_6 = arith.constant 0 : index
    %13 = vector.load %arg1[%12, %c0_6] : memref<16x128xf32, #tpu.memory_space<vmem>>, vector<1x128xf32>
    %14 = arith.index_cast %c1_i32 : i32 to index
    %c0_7 = arith.constant 0 : index
    %15 = vector.load %arg8[%14, %c0_7] : memref<8x128xf32, #tpu.memory_space<vmem>>, vector<1x128xf32>
    tpu.vector_store %arg8[%14, %c0_7], %13 {strides = array<i32>} : memref<8x128xf32, #tpu.memory_space<vmem>>, vector<1x128xf32>,
    %c2_i32 = arith.constant 2 : i32
    %16 = arith.index_cast %c2_i32 : i32 to index
    %17 = memref.load %arg0[%16] : memref<8xi32, #tpu.memory_space<smem>>
    %18 = arith.index_cast %17 : i32 to index
    %c0_8 = arith.constant 0 : index
    %19 = vector.load %arg1[%18, %c0_8] : memref<16x128xf32, #tpu.memory_space<vmem>>, vector<1x128xf32>
    %20 = arith.index_cast %c2_i32 : i32 to index
    %c0_9 = arith.constant 0 : index
    %21 = vector.load %arg8[%20, %c0_9] : memref<8x128xf32, #tpu.memory_space<vmem>>, vector<1x128xf32>
    tpu.vector_store %arg8[%20, %c0_9], %19 {strides = array<i32>} : memref<8x128xf32, #tpu.memory_space<vmem>>, vector<1x128xf32>,
    %c3_i32 = arith.constant 3 : i32
    %22 = arith.index_cast %c3_i32 : i32 to index
    %23 = memref.load %arg0[%22] : memref<8xi32, #tpu.memory_space<smem>>
    %24 = arith.index_cast %23 : i32 to index
    %c0_10 = arith.constant 0 : index
    %25 = vector.load %arg1[%24, %c0_10] : memref<16x128xf32, #tpu.memory_space<vmem>>, vector<1x128xf32>
    %26 = arith.index_cast %c3_i32 : i32 to index
    %c0_11 = arith.constant 0 : index
    %27 = vector.load %arg8[%26, %c0_11] : memref<8x128xf32, #tpu.memory_space<vmem>>, vector<1x128xf32>
    tpu.vector_store %arg8[%26, %c0_11], %25 {strides = array<i32>} : memref<8x128xf32, #tpu.memory_space<vmem>>, vector<1x128xf32>,
    %c4_i32 = arith.constant 4 : i32
    %28 = arith.index_cast %c4_i32 : i32 to index
    %29 = memref.load %arg0[%28] : memref<8xi32, #tpu.memory_space<smem>>
    %30 = arith.index_cast %29 : i32 to index
    %c0_12 = arith.constant 0 : index
    %31 = vector.load %arg1[%30, %c0_12] : memref<16x128xf32, #tpu.memory_space<vmem>>, vector<1x128xf32>
    %32 = arith.index_cast %c4_i32 : i32 to index
    %c0_13 = arith.constant 0 : index
    %33 = vector.load %arg8[%32, %c0_13] : memref<8x128xf32, #tpu.memory_space<vmem>>, vector<1x128xf32>
    tpu.vector_store %arg8[%32, %c0_13], %31 {strides = array<i32>} : memref<8x128xf32, #tpu.memory_space<vmem>>, vector<1x128xf32>,
    %c5_i32 = arith.constant 5 : i32
    %34 = arith.index_cast %c5_i32 : i32 to index
    %35 = memref.load %arg0[%34] : memref<8xi32, #tpu.memory_space<smem>>
    %36 = arith.index_cast %35 : i32 to index
    %c0_14 = arith.constant 0 : index
    %37 = vector.load %arg1[%36, %c0_14] : memref<16x128xf32, #tpu.memory_space<vmem>>, vector<1x128xf32>
    %38 = arith.index_cast %c5_i32 : i32 to index
    %c0_15 = arith.constant 0 : index
    %39 = vector.load %arg8[%38, %c0_15] : memref<8x128xf32, #tpu.memory_space<vmem>>, vector<1x128xf32>
    tpu.vector_store %arg8[%38, %c0_15], %37 {strides = array<i32>} : memref<8x128xf32, #tpu.memory_space<vmem>>, vector<1x128xf32>,
    %c6_i32 = arith.constant 6 : i32
    %40 = arith.index_cast %c6_i32 : i32 to index
    %41 = memref.load %arg0[%40] : memref<8xi32, #tpu.memory_space<smem>>
    %42 = arith.index_cast %41 : i32 to index
    %c0_16 = arith.constant 0 : index
    %43 = vector.load %arg1[%42, %c0_16] : memref<16x128xf32, #tpu.memory_space<vmem>>, vector<1x128xf32>
    %44 = arith.index_cast %c6_i32 : i32 to index
    %c0_17 = arith.constant 0 : index
    %45 = vector.load %arg8[%44, %c0_17] : memref<8x128xf32, #tpu.memory_space<vmem>>, vector<1x128xf32>
    tpu.vector_store %arg8[%44, %c0_17], %43 {strides = array<i32>} : memref<8x128xf32, #tpu.memory_space<vmem>>, vector<1x128xf32>,
    %c7_i32 = arith.constant 7 : i32
    %46 = arith.index_cast %c7_i32 : i32 to index
    %47 = memref.load %arg0[%46] : memref<8xi32, #tpu.memory_space<smem>>
    %48 = arith.index_cast %47 : i32 to index
    %c0_18 = arith.constant 0 : index
    %49 = vector.load %arg1[%48, %c0_18] : memref<16x128xf32, #tpu.memory_space<vmem>>, vector<1x128xf32>
    %50 = arith.index_cast %c7_i32 : i32 to index
    %c0_19 = arith.constant 0 : index
    %51 = vector.load %arg8[%50, %c0_19] : memref<8x128xf32, #tpu.memory_space<vmem>>, vector<1x128xf32>
    tpu.vector_store %arg8[%50, %c0_19], %49 {strides = array<i32>} : memref<8x128xf32, #tpu.memory_space<vmem>>, vector<1x128xf32>,
    %c8_i32 = arith.constant 8 : i32
    %c0_20 = arith.constant 0 : index
    %c0_21 = arith.constant 0 : index
    %52 = vector.load %arg8[%c0_20, %c0_21] : memref<8x128xf32, #tpu.memory_space<vmem>>, vector<8x128xf32>
    %c0_22 = arith.constant 0 : index
    %c0_23 = arith.constant 0 : index
    %53 = vector.load %arg3[%c0_22, %c0_23] : memref<128x384xf32, #tpu.memory_space<vmem>>, vector<128x384xf32>
    %cst_24 = arith.constant dense<0.000000e+00> : vector<8x384xf32>
    %54 = tpu.matmul %52, %53, %cst_24 {dimension_numbers = #tpu.dot_dimension_numbers<[1], [0], [0], [1], [0, 0, 1, 1], [], []>} : vector<8x128xf32>, vector<128x384xf32>, vector<8x384xf32> -> vector<8x384xf32>
    %c0_25 = arith.constant 0 : index
    %c0_26 = arith.constant 0 : index
    %55 = vector.load %arg5[%c0_25, %c0_26] : memref<1x384xf32, #tpu.memory_space<vmem>>, vector<1x384xf32>
    %56 = vector.broadcast %55 : vector<1x384xf32> to vector<8x384xf32>
    %57 = arith.addf %54, %56 : vector<8x384xf32>
    %c0_27 = arith.constant 0 : index
    %c0_28 = arith.constant 0 : index
    %58 = vector.load %arg9[%c0_27, %c0_28] : memref<8x384xf32, #tpu.memory_space<vmem>>, vector<8x384xf32>
    tpu.vector_store %arg9[%c0_27, %c0_28], %57 {strides = array<i32>} : memref<8x384xf32, #tpu.memory_space<vmem>>, vector<8x384xf32>,
    %c0_29 = arith.constant 0 : index
    %c0_30 = arith.constant 0 : index
    %59 = vector.load %arg2[%c0_29, %c0_30] : memref<1x128xf32, #tpu.memory_space<vmem>>, vector<1x128xf32>
    %c0_i32_31 = arith.constant 0 : i32
    %60 = arith.index_cast %c0_i32_31 : i32 to index
    %c0_32 = arith.constant 0 : index
    %61 = vector.load %arg9[%60, %c0_32] : memref<8x384xf32, #tpu.memory_space<vmem>>, vector<1x384xf32>
    %c0_33 = arith.constant 0 : index
    %c0_34 = arith.constant 0 : index
    %62 = vector.load %arg4[%c0_33, %c0_34] : memref<128x384xf32, #tpu.memory_space<vmem>>, vector<128x384xf32>
    %cst_35 = arith.constant dense<0.000000e+00> : vector<1x384xf32>
    %63 = tpu.matmul %59, %62, %cst_35 {dimension_numbers = #tpu.dot_dimension_numbers<[1], [0], [0], [1], [0, 0, 1, 1], [], []>} : vector<1x128xf32>, vector<128x384xf32>, vector<1x384xf32> -> vector<1x384xf32>
    %c0_36 = arith.constant 0 : index
    %c0_37 = arith.constant 0 : index
    %64 = vector.load %arg6[%c0_36, %c0_37] : memref<1x384xf32, #tpu.memory_space<vmem>>, vector<1x384xf32>
    %65 = arith.addf %63, %64 : vector<1x384xf32>
    %66 = vector.extract_strided_slice %61 {offsets = [0, 0], sizes = [1, 128], strides = [1, 1]} : vector<1x384xf32> to vector<1x128xf32>
    %67 = vector.extract_strided_slice %65 {offsets = [0, 0], sizes = [1, 128], strides = [1, 1]} : vector<1x384xf32> to vector<1x128xf32>
    %68 = arith.addf %66, %67 : vector<1x128xf32>
    %69 = arith.negf %68 : vector<1x128xf32>
    %70 = math.exp %69 : vector<1x128xf32>
    %cst_38 = arith.constant 1.000000e+00 : f32
    %71 = vector.broadcast %cst_38 : f32 to vector<1x128xf32>
    %72 = arith.addf %71, %70 : vector<1x128xf32>
    %73 = arith.divf %71, %72 : vector<1x128xf32>
    %74 = vector.extract_strided_slice %61 {offsets = [0, 128], sizes = [1, 128], strides = [1, 1]} : vector<1x384xf32> to vector<1x128xf32>
    %75 = vector.extract_strided_slice %65 {offsets = [0, 128], sizes = [1, 128], strides = [1, 1]} : vector<1x384xf32> to vector<1x128xf32>
    %76 = arith.addf %74, %75 : vector<1x128xf32>
    %77 = arith.negf %76 : vector<1x128xf32>
    %78 = math.exp %77 : vector<1x128xf32>
    %cst_39 = arith.constant 1.000000e+00 : f32
    %79 = vector.broadcast %cst_39 : f32 to vector<1x128xf32>
    %80 = arith.addf %79, %78 : vector<1x128xf32>
    %81 = arith.divf %79, %80 : vector<1x128xf32>
    %82 = vector.extract_strided_slice %61 {offsets = [0, 256], sizes = [1, 128], strides = [1, 1]} : vector<1x384xf32> to vector<1x128xf32>
    %83 = vector.extract_strided_slice %65 {offsets = [0, 256], sizes = [1, 128], strides = [1, 1]} : vector<1x384xf32> to vector<1x128xf32>
    %84 = arith.mulf %73, %83 : vector<1x128xf32>
    %85 = arith.addf %82, %84 : vector<1x128xf32>
    %86 = math.tanh %85 : vector<1x128xf32>
    %cst_40 = arith.constant 1.000000e+00 : f32
    %87 = vector.broadcast %cst_40 : f32 to vector<1x128xf32>
    %88 = arith.subf %87, %81 : vector<1x128xf32>
    %89 = arith.mulf %88, %86 : vector<1x128xf32>
    %90 = arith.mulf %81, %59 : vector<1x128xf32>
    %91 = arith.addf %89, %90 : vector<1x128xf32>
    %92 = arith.index_cast %c0_i32_31 : i32 to index
    %c0_41 = arith.constant 0 : index
    %93 = vector.load %arg7[%92, %c0_41] : memref<8x128xf32, #tpu.memory_space<vmem>>, vector<1x128xf32>
    tpu.vector_store %arg7[%92, %c0_41], %91 {strides = array<i32>} : memref<8x128xf32, #tpu.memory_space<vmem>>, vector<1x128xf32>,
    %c1_i32_42 = arith.constant 1 : i32
    %94 = arith.index_cast %c1_i32_42 : i32 to index
    %c0_43 = arith.constant 0 : index
    %95 = vector.load %arg9[%94, %c0_43] : memref<8x384xf32, #tpu.memory_space<vmem>>, vector<1x384xf32>
    %c0_44 = arith.constant 0 : index
    %c0_45 = arith.constant 0 : index
    %96 = vector.load %arg4[%c0_44, %c0_45] : memref<128x384xf32, #tpu.memory_space<vmem>>, vector<128x384xf32>
    %cst_46 = arith.constant dense<0.000000e+00> : vector<1x384xf32>
    %97 = tpu.matmul %91, %96, %cst_46 {dimension_numbers = #tpu.dot_dimension_numbers<[1], [0], [0], [1], [0, 0, 1, 1], [], []>} : vector<1x128xf32>, vector<128x384xf32>, vector<1x384xf32> -> vector<1x384xf32>
    %c0_47 = arith.constant 0 : index
    %c0_48 = arith.constant 0 : index
    %98 = vector.load %arg6[%c0_47, %c0_48] : memref<1x384xf32, #tpu.memory_space<vmem>>, vector<1x384xf32>
    %99 = arith.addf %97, %98 : vector<1x384xf32>
    %100 = vector.extract_strided_slice %95 {offsets = [0, 0], sizes = [1, 128], strides = [1, 1]} : vector<1x384xf32> to vector<1x128xf32>
    %101 = vector.extract_strided_slice %99 {offsets = [0, 0], sizes = [1, 128], strides = [1, 1]} : vector<1x384xf32> to vector<1x128xf32>
    %102 = arith.addf %100, %101 : vector<1x128xf32>
    %103 = arith.negf %102 : vector<1x128xf32>
    %104 = math.exp %103 : vector<1x128xf32>
    %cst_49 = arith.constant 1.000000e+00 : f32
    %105 = vector.broadcast %cst_49 : f32 to vector<1x128xf32>
    %106 = arith.addf %105, %104 : vector<1x128xf32>
    %107 = arith.divf %105, %106 : vector<1x128xf32>
    %108 = vector.extract_strided_slice %95 {offsets = [0, 128], sizes = [1, 128], strides = [1, 1]} : vector<1x384xf32> to vector<1x128xf32>
    %109 = vector.extract_strided_slice %99 {offsets = [0, 128], sizes = [1, 128], strides = [1, 1]} : vector<1x384xf32> to vector<1x128xf32>
    %110 = arith.addf %108, %109 : vector<1x128xf32>
    %111 = arith.negf %110 : vector<1x128xf32>
    %112 = math.exp %111 : vector<1x128xf32>
    %cst_50 = arith.constant 1.000000e+00 : f32
    %113 = vector.broadcast %cst_50 : f32 to vector<1x128xf32>
    %114 = arith.addf %113, %112 : vector<1x128xf32>
    %115 = arith.divf %113, %114 : vector<1x128xf32>
    %116 = vector.extract_strided_slice %95 {offsets = [0, 256], sizes = [1, 128], strides = [1, 1]} : vector<1x384xf32> to vector<1x128xf32>
    %117 = vector.extract_strided_slice %99 {offsets = [0, 256], sizes = [1, 128], strides = [1, 1]} : vector<1x384xf32> to vector<1x128xf32>
    %118 = arith.mulf %107, %117 : vector<1x128xf32>
    %119 = arith.addf %116, %118 : vector<1x128xf32>
    %120 = math.tanh %119 : vector<1x128xf32>
    %cst_51 = arith.constant 1.000000e+00 : f32
    %121 = vector.broadcast %cst_51 : f32 to vector<1x128xf32>
    %122 = arith.subf %121, %115 : vector<1x128xf32>
    %123 = arith.mulf %122, %120 : vector<1x128xf32>
    %124 = arith.mulf %115, %91 : vector<1x128xf32>
    %125 = arith.addf %123, %124 : vector<1x128xf32>
    %126 = arith.index_cast %c1_i32_42 : i32 to index
    %c0_52 = arith.constant 0 : index
    %127 = vector.load %arg7[%126, %c0_52] : memref<8x128xf32, #tpu.memory_space<vmem>>, vector<1x128xf32>
    tpu.vector_store %arg7[%126, %c0_52], %125 {strides = array<i32>} : memref<8x128xf32, #tpu.memory_space<vmem>>, vector<1x128xf32>,
    %c2_i32_53 = arith.constant 2 : i32
    %128 = arith.index_cast %c2_i32_53 : i32 to index
    %c0_54 = arith.constant 0 : index
    %129 = vector.load %arg9[%128, %c0_54] : memref<8x384xf32, #tpu.memory_space<vmem>>, vector<1x384xf32>
    %c0_55 = arith.constant 0 : index
    %c0_56 = arith.constant 0 : index
    %130 = vector.load %arg4[%c0_55, %c0_56] : memref<128x384xf32, #tpu.memory_space<vmem>>, vector<128x384xf32>
    %cst_57 = arith.constant dense<0.000000e+00> : vector<1x384xf32>
    %131 = tpu.matmul %125, %130, %cst_57 {dimension_numbers = #tpu.dot_dimension_numbers<[1], [0], [0], [1], [0, 0, 1, 1], [], []>} : vector<1x128xf32>, vector<128x384xf32>, vector<1x384xf32> -> vector<1x384xf32>
    %c0_58 = arith.constant 0 : index
    %c0_59 = arith.constant 0 : index
    %132 = vector.load %arg6[%c0_58, %c0_59] : memref<1x384xf32, #tpu.memory_space<vmem>>, vector<1x384xf32>
    %133 = arith.addf %131, %132 : vector<1x384xf32>
    %134 = vector.extract_strided_slice %129 {offsets = [0, 0], sizes = [1, 128], strides = [1, 1]} : vector<1x384xf32> to vector<1x128xf32>
    %135 = vector.extract_strided_slice %133 {offsets = [0, 0], sizes = [1, 128], strides = [1, 1]} : vector<1x384xf32> to vector<1x128xf32>
    %136 = arith.addf %134, %135 : vector<1x128xf32>
    %137 = arith.negf %136 : vector<1x128xf32>
    %138 = math.exp %137 : vector<1x128xf32>
    %cst_60 = arith.constant 1.000000e+00 : f32
    %139 = vector.broadcast %cst_60 : f32 to vector<1x128xf32>
    %140 = arith.addf %139, %138 : vector<1x128xf32>
    %141 = arith.divf %139, %140 : vector<1x128xf32>
    %142 = vector.extract_strided_slice %129 {offsets = [0, 128], sizes = [1, 128], strides = [1, 1]} : vector<1x384xf32> to vector<1x128xf32>
    %143 = vector.extract_strided_slice %133 {offsets = [0, 128], sizes = [1, 128], strides = [1, 1]} : vector<1x384xf32> to vector<1x128xf32>
    %144 = arith.addf %142, %143 : vector<1x128xf32>
    %145 = arith.negf %144 : vector<1x128xf32>
    %146 = math.exp %145 : vector<1x128xf32>
    %cst_61 = arith.constant 1.000000e+00 : f32
    %147 = vector.broadcast %cst_61 : f32 to vector<1x128xf32>
    %148 = arith.addf %147, %146 : vector<1x128xf32>
    %149 = arith.divf %147, %148 : vector<1x128xf32>
    %150 = vector.extract_strided_slice %129 {offsets = [0, 256], sizes = [1, 128], strides = [1, 1]} : vector<1x384xf32> to vector<1x128xf32>
    %151 = vector.extract_strided_slice %133 {offsets = [0, 256], sizes = [1, 128], strides = [1, 1]} : vector<1x384xf32> to vector<1x128xf32>
    %152 = arith.mulf %141, %151 : vector<1x128xf32>
    %153 = arith.addf %150, %152 : vector<1x128xf32>
    %154 = math.tanh %153 : vector<1x128xf32>
    %cst_62 = arith.constant 1.000000e+00 : f32
    %155 = vector.broadcast %cst_62 : f32 to vector<1x128xf32>
    %156 = arith.subf %155, %149 : vector<1x128xf32>
    %157 = arith.mulf %156, %154 : vector<1x128xf32>
    %158 = arith.mulf %149, %125 : vector<1x128xf32>
    %159 = arith.addf %157, %158 : vector<1x128xf32>
    %160 = arith.index_cast %c2_i32_53 : i32 to index
    %c0_63 = arith.constant 0 : index
    %161 = vector.load %arg7[%160, %c0_63] : memref<8x128xf32, #tpu.memory_space<vmem>>, vector<1x128xf32>
    tpu.vector_store %arg7[%160, %c0_63], %159 {strides = array<i32>} : memref<8x128xf32, #tpu.memory_space<vmem>>, vector<1x128xf32>,
    %c3_i32_64 = arith.constant 3 : i32
    %162 = arith.index_cast %c3_i32_64 : i32 to index
    %c0_65 = arith.constant 0 : index
    %163 = vector.load %arg9[%162, %c0_65] : memref<8x384xf32, #tpu.memory_space<vmem>>, vector<1x384xf32>
    %c0_66 = arith.constant 0 : index
    %c0_67 = arith.constant 0 : index
    %164 = vector.load %arg4[%c0_66, %c0_67] : memref<128x384xf32, #tpu.memory_space<vmem>>, vector<128x384xf32>
    %cst_68 = arith.constant dense<0.000000e+00> : vector<1x384xf32>
    %165 = tpu.matmul %159, %164, %cst_68 {dimension_numbers = #tpu.dot_dimension_numbers<[1], [0], [0], [1], [0, 0, 1, 1], [], []>} : vector<1x128xf32>, vector<128x384xf32>, vector<1x384xf32> -> vector<1x384xf32>
    %c0_69 = arith.constant 0 : index
    %c0_70 = arith.constant 0 : index
    %166 = vector.load %arg6[%c0_69, %c0_70] : memref<1x384xf32, #tpu.memory_space<vmem>>, vector<1x384xf32>
    %167 = arith.addf %165, %166 : vector<1x384xf32>
    %168 = vector.extract_strided_slice %163 {offsets = [0, 0], sizes = [1, 128], strides = [1, 1]} : vector<1x384xf32> to vector<1x128xf32>
    %169 = vector.extract_strided_slice %167 {offsets = [0, 0], sizes = [1, 128], strides = [1, 1]} : vector<1x384xf32> to vector<1x128xf32>
    %170 = arith.addf %168, %169 : vector<1x128xf32>
    %171 = arith.negf %170 : vector<1x128xf32>
    %172 = math.exp %171 : vector<1x128xf32>
    %cst_71 = arith.constant 1.000000e+00 : f32
    %173 = vector.broadcast %cst_71 : f32 to vector<1x128xf32>
    %174 = arith.addf %173, %172 : vector<1x128xf32>
    %175 = arith.divf %173, %174 : vector<1x128xf32>
    %176 = vector.extract_strided_slice %163 {offsets = [0, 128], sizes = [1, 128], strides = [1, 1]} : vector<1x384xf32> to vector<1x128xf32>
    %177 = vector.extract_strided_slice %167 {offsets = [0, 128], sizes = [1, 128], strides = [1, 1]} : vector<1x384xf32> to vector<1x128xf32>
    %178 = arith.addf %176, %177 : vector<1x128xf32>
    %179 = arith.negf %178 : vector<1x128xf32>
    %180 = math.exp %179 : vector<1x128xf32>
    %cst_72 = arith.constant 1.000000e+00 : f32
    %181 = vector.broadcast %cst_72 : f32 to vector<1x128xf32>
    %182 = arith.addf %181, %180 : vector<1x128xf32>
    %183 = arith.divf %181, %182 : vector<1x128xf32>
    %184 = vector.extract_strided_slice %163 {offsets = [0, 256], sizes = [1, 128], strides = [1, 1]} : vector<1x384xf32> to vector<1x128xf32>
    %185 = vector.extract_strided_slice %167 {offsets = [0, 256], sizes = [1, 128], strides = [1, 1]} : vector<1x384xf32> to vector<1x128xf32>
    %186 = arith.mulf %175, %185 : vector<1x128xf32>
    %187 = arith.addf %184, %186 : vector<1x128xf32>
    %188 = math.tanh %187 : vector<1x128xf32>
    %cst_73 = arith.constant 1.000000e+00 : f32
    %189 = vector.broadcast %cst_73 : f32 to vector<1x128xf32>
    %190 = arith.subf %189, %183 : vector<1x128xf32>
    %191 = arith.mulf %190, %188 : vector<1x128xf32>
    %192 = arith.mulf %183, %159 : vector<1x128xf32>
    %193 = arith.addf %191, %192 : vector<1x128xf32>
    %194 = arith.index_cast %c3_i32_64 : i32 to index
    %c0_74 = arith.constant 0 : index
    %195 = vector.load %arg7[%194, %c0_74] : memref<8x128xf32, #tpu.memory_space<vmem>>, vector<1x128xf32>
    tpu.vector_store %arg7[%194, %c0_74], %193 {strides = array<i32>} : memref<8x128xf32, #tpu.memory_space<vmem>>, vector<1x128xf32>,
    %c4_i32_75 = arith.constant 4 : i32
    %196 = arith.index_cast %c4_i32_75 : i32 to index
    %c0_76 = arith.constant 0 : index
    %197 = vector.load %arg9[%196, %c0_76] : memref<8x384xf32, #tpu.memory_space<vmem>>, vector<1x384xf32>
    %c0_77 = arith.constant 0 : index
    %c0_78 = arith.constant 0 : index
    %198 = vector.load %arg4[%c0_77, %c0_78] : memref<128x384xf32, #tpu.memory_space<vmem>>, vector<128x384xf32>
    %cst_79 = arith.constant dense<0.000000e+00> : vector<1x384xf32>
    %199 = tpu.matmul %193, %198, %cst_79 {dimension_numbers = #tpu.dot_dimension_numbers<[1], [0], [0], [1], [0, 0, 1, 1], [], []>} : vector<1x128xf32>, vector<128x384xf32>, vector<1x384xf32> -> vector<1x384xf32>
    %c0_80 = arith.constant 0 : index
    %c0_81 = arith.constant 0 : index
    %200 = vector.load %arg6[%c0_80, %c0_81] : memref<1x384xf32, #tpu.memory_space<vmem>>, vector<1x384xf32>
    %201 = arith.addf %199, %200 : vector<1x384xf32>
    %202 = vector.extract_strided_slice %197 {offsets = [0, 0], sizes = [1, 128], strides = [1, 1]} : vector<1x384xf32> to vector<1x128xf32>
    %203 = vector.extract_strided_slice %201 {offsets = [0, 0], sizes = [1, 128], strides = [1, 1]} : vector<1x384xf32> to vector<1x128xf32>
    %204 = arith.addf %202, %203 : vector<1x128xf32>
    %205 = arith.negf %204 : vector<1x128xf32>
    %206 = math.exp %205 : vector<1x128xf32>
    %cst_82 = arith.constant 1.000000e+00 : f32
    %207 = vector.broadcast %cst_82 : f32 to vector<1x128xf32>
    %208 = arith.addf %207, %206 : vector<1x128xf32>
    %209 = arith.divf %207, %208 : vector<1x128xf32>
    %210 = vector.extract_strided_slice %197 {offsets = [0, 128], sizes = [1, 128], strides = [1, 1]} : vector<1x384xf32> to vector<1x128xf32>
    %211 = vector.extract_strided_slice %201 {offsets = [0, 128], sizes = [1, 128], strides = [1, 1]} : vector<1x384xf32> to vector<1x128xf32>
    %212 = arith.addf %210, %211 : vector<1x128xf32>
    %213 = arith.negf %212 : vector<1x128xf32>
    %214 = math.exp %213 : vector<1x128xf32>
    %cst_83 = arith.constant 1.000000e+00 : f32
    %215 = vector.broadcast %cst_83 : f32 to vector<1x128xf32>
    %216 = arith.addf %215, %214 : vector<1x128xf32>
    %217 = arith.divf %215, %216 : vector<1x128xf32>
    %218 = vector.extract_strided_slice %197 {offsets = [0, 256], sizes = [1, 128], strides = [1, 1]} : vector<1x384xf32> to vector<1x128xf32>
    %219 = vector.extract_strided_slice %201 {offsets = [0, 256], sizes = [1, 128], strides = [1, 1]} : vector<1x384xf32> to vector<1x128xf32>
    %220 = arith.mulf %209, %219 : vector<1x128xf32>
    %221 = arith.addf %218, %220 : vector<1x128xf32>
    %222 = math.tanh %221 : vector<1x128xf32>
    %cst_84 = arith.constant 1.000000e+00 : f32
    %223 = vector.broadcast %cst_84 : f32 to vector<1x128xf32>
    %224 = arith.subf %223, %217 : vector<1x128xf32>
    %225 = arith.mulf %224, %222 : vector<1x128xf32>
    %226 = arith.mulf %217, %193 : vector<1x128xf32>
    %227 = arith.addf %225, %226 : vector<1x128xf32>
    %228 = arith.index_cast %c4_i32_75 : i32 to index
    %c0_85 = arith.constant 0 : index
    %229 = vector.load %arg7[%228, %c0_85] : memref<8x128xf32, #tpu.memory_space<vmem>>, vector<1x128xf32>
    tpu.vector_store %arg7[%228, %c0_85], %227 {strides = array<i32>} : memref<8x128xf32, #tpu.memory_space<vmem>>, vector<1x128xf32>,
    %c5_i32_86 = arith.constant 5 : i32
    %230 = arith.index_cast %c5_i32_86 : i32 to index
    %c0_87 = arith.constant 0 : index
    %231 = vector.load %arg9[%230, %c0_87] : memref<8x384xf32, #tpu.memory_space<vmem>>, vector<1x384xf32>
    %c0_88 = arith.constant 0 : index
    %c0_89 = arith.constant 0 : index
    %232 = vector.load %arg4[%c0_88, %c0_89] : memref<128x384xf32, #tpu.memory_space<vmem>>, vector<128x384xf32>
    %cst_90 = arith.constant dense<0.000000e+00> : vector<1x384xf32>
    %233 = tpu.matmul %227, %232, %cst_90 {dimension_numbers = #tpu.dot_dimension_numbers<[1], [0], [0], [1], [0, 0, 1, 1], [], []>} : vector<1x128xf32>, vector<128x384xf32>, vector<1x384xf32> -> vector<1x384xf32>
    %c0_91 = arith.constant 0 : index
    %c0_92 = arith.constant 0 : index
    %234 = vector.load %arg6[%c0_91, %c0_92] : memref<1x384xf32, #tpu.memory_space<vmem>>, vector<1x384xf32>
    %235 = arith.addf %233, %234 : vector<1x384xf32>
    %236 = vector.extract_strided_slice %231 {offsets = [0, 0], sizes = [1, 128], strides = [1, 1]} : vector<1x384xf32> to vector<1x128xf32>
    %237 = vector.extract_strided_slice %235 {offsets = [0, 0], sizes = [1, 128], strides = [1, 1]} : vector<1x384xf32> to vector<1x128xf32>
    %238 = arith.addf %236, %237 : vector<1x128xf32>
    %239 = arith.negf %238 : vector<1x128xf32>
    %240 = math.exp %239 : vector<1x128xf32>
    %cst_93 = arith.constant 1.000000e+00 : f32
    %241 = vector.broadcast %cst_93 : f32 to vector<1x128xf32>
    %242 = arith.addf %241, %240 : vector<1x128xf32>
    %243 = arith.divf %241, %242 : vector<1x128xf32>
    %244 = vector.extract_strided_slice %231 {offsets = [0, 128], sizes = [1, 128], strides = [1, 1]} : vector<1x384xf32> to vector<1x128xf32>
    %245 = vector.extract_strided_slice %235 {offsets = [0, 128], sizes = [1, 128], strides = [1, 1]} : vector<1x384xf32> to vector<1x128xf32>
    %246 = arith.addf %244, %245 : vector<1x128xf32>
    %247 = arith.negf %246 : vector<1x128xf32>
    %248 = math.exp %247 : vector<1x128xf32>
    %cst_94 = arith.constant 1.000000e+00 : f32
    %249 = vector.broadcast %cst_94 : f32 to vector<1x128xf32>
    %250 = arith.addf %249, %248 : vector<1x128xf32>
    %251 = arith.divf %249, %250 : vector<1x128xf32>
    %252 = vector.extract_strided_slice %231 {offsets = [0, 256], sizes = [1, 128], strides = [1, 1]} : vector<1x384xf32> to vector<1x128xf32>
    %253 = vector.extract_strided_slice %235 {offsets = [0, 256], sizes = [1, 128], strides = [1, 1]} : vector<1x384xf32> to vector<1x128xf32>
    %254 = arith.mulf %243, %253 : vector<1x128xf32>
    %255 = arith.addf %252, %254 : vector<1x128xf32>
    %256 = math.tanh %255 : vector<1x128xf32>
    %cst_95 = arith.constant 1.000000e+00 : f32
    %257 = vector.broadcast %cst_95 : f32 to vector<1x128xf32>
    %258 = arith.subf %257, %251 : vector<1x128xf32>
    %259 = arith.mulf %258, %256 : vector<1x128xf32>
    %260 = arith.mulf %251, %227 : vector<1x128xf32>
    %261 = arith.addf %259, %260 : vector<1x128xf32>
    %262 = arith.index_cast %c5_i32_86 : i32 to index
    %c0_96 = arith.constant 0 : index
    %263 = vector.load %arg7[%262, %c0_96] : memref<8x128xf32, #tpu.memory_space<vmem>>, vector<1x128xf32>
    tpu.vector_store %arg7[%262, %c0_96], %261 {strides = array<i32>} : memref<8x128xf32, #tpu.memory_space<vmem>>, vector<1x128xf32>,
    %c6_i32_97 = arith.constant 6 : i32
    %264 = arith.index_cast %c6_i32_97 : i32 to index
    %c0_98 = arith.constant 0 : index
    %265 = vector.load %arg9[%264, %c0_98] : memref<8x384xf32, #tpu.memory_space<vmem>>, vector<1x384xf32>
    %c0_99 = arith.constant 0 : index
    %c0_100 = arith.constant 0 : index
    %266 = vector.load %arg4[%c0_99, %c0_100] : memref<128x384xf32, #tpu.memory_space<vmem>>, vector<128x384xf32>
    %cst_101 = arith.constant dense<0.000000e+00> : vector<1x384xf32>
    %267 = tpu.matmul %261, %266, %cst_101 {dimension_numbers = #tpu.dot_dimension_numbers<[1], [0], [0], [1], [0, 0, 1, 1], [], []>} : vector<1x128xf32>, vector<128x384xf32>, vector<1x384xf32> -> vector<1x384xf32>
    %c0_102 = arith.constant 0 : index
    %c0_103 = arith.constant 0 : index
    %268 = vector.load %arg6[%c0_102, %c0_103] : memref<1x384xf32, #tpu.memory_space<vmem>>, vector<1x384xf32>
    %269 = arith.addf %267, %268 : vector<1x384xf32>
    %270 = vector.extract_strided_slice %265 {offsets = [0, 0], sizes = [1, 128], strides = [1, 1]} : vector<1x384xf32> to vector<1x128xf32>
    %271 = vector.extract_strided_slice %269 {offsets = [0, 0], sizes = [1, 128], strides = [1, 1]} : vector<1x384xf32> to vector<1x128xf32>
    %272 = arith.addf %270, %271 : vector<1x128xf32>
    %273 = arith.negf %272 : vector<1x128xf32>
    %274 = math.exp %273 : vector<1x128xf32>
    %cst_104 = arith.constant 1.000000e+00 : f32
    %275 = vector.broadcast %cst_104 : f32 to vector<1x128xf32>
    %276 = arith.addf %275, %274 : vector<1x128xf32>
    %277 = arith.divf %275, %276 : vector<1x128xf32>
    %278 = vector.extract_strided_slice %265 {offsets = [0, 128], sizes = [1, 128], strides = [1, 1]} : vector<1x384xf32> to vector<1x128xf32>
    %279 = vector.extract_strided_slice %269 {offsets = [0, 128], sizes = [1, 128], strides = [1, 1]} : vector<1x384xf32> to vector<1x128xf32>
    %280 = arith.addf %278, %279 : vector<1x128xf32>
    %281 = arith.negf %280 : vector<1x128xf32>
    %282 = math.exp %281 : vector<1x128xf32>
    %cst_105 = arith.constant 1.000000e+00 : f32
    %283 = vector.broadcast %cst_105 : f32 to vector<1x128xf32>
    %284 = arith.addf %283, %282 : vector<1x128xf32>
    %285 = arith.divf %283, %284 : vector<1x128xf32>
    %286 = vector.extract_strided_slice %265 {offsets = [0, 256], sizes = [1, 128], strides = [1, 1]} : vector<1x384xf32> to vector<1x128xf32>
    %287 = vector.extract_strided_slice %269 {offsets = [0, 256], sizes = [1, 128], strides = [1, 1]} : vector<1x384xf32> to vector<1x128xf32>
    %288 = arith.mulf %277, %287 : vector<1x128xf32>
    %289 = arith.addf %286, %288 : vector<1x128xf32>
    %290 = math.tanh %289 : vector<1x128xf32>
    %cst_106 = arith.constant 1.000000e+00 : f32
    %291 = vector.broadcast %cst_106 : f32 to vector<1x128xf32>
    %292 = arith.subf %291, %285 : vector<1x128xf32>
    %293 = arith.mulf %292, %290 : vector<1x128xf32>
    %294 = arith.mulf %285, %261 : vector<1x128xf32>
    %295 = arith.addf %293, %294 : vector<1x128xf32>
    %296 = arith.index_cast %c6_i32_97 : i32 to index
    %c0_107 = arith.constant 0 : index
    %297 = vector.load %arg7[%296, %c0_107] : memref<8x128xf32, #tpu.memory_space<vmem>>, vector<1x128xf32>
    tpu.vector_store %arg7[%296, %c0_107], %295 {strides = array<i32>} : memref<8x128xf32, #tpu.memory_space<vmem>>, vector<1x128xf32>,
    %c7_i32_108 = arith.constant 7 : i32
    %298 = arith.index_cast %c7_i32_108 : i32 to index
    %c0_109 = arith.constant 0 : index
    %299 = vector.load %arg9[%298, %c0_109] : memref<8x384xf32, #tpu.memory_space<vmem>>, vector<1x384xf32>
    %c0_110 = arith.constant 0 : index
    %c0_111 = arith.constant 0 : index
    %300 = vector.load %arg4[%c0_110, %c0_111] : memref<128x384xf32, #tpu.memory_space<vmem>>, vector<128x384xf32>
    %cst_112 = arith.constant dense<0.000000e+00> : vector<1x384xf32>
    %301 = tpu.matmul %295, %300, %cst_112 {dimension_numbers = #tpu.dot_dimension_numbers<[1], [0], [0], [1], [0, 0, 1, 1], [], []>} : vector<1x128xf32>, vector<128x384xf32>, vector<1x384xf32> -> vector<1x384xf32>
    %c0_113 = arith.constant 0 : index
    %c0_114 = arith.constant 0 : index
    %302 = vector.load %arg6[%c0_113, %c0_114] : memref<1x384xf32, #tpu.memory_space<vmem>>, vector<1x384xf32>
    %303 = arith.addf %301, %302 : vector<1x384xf32>
    %304 = vector.extract_strided_slice %299 {offsets = [0, 0], sizes = [1, 128], strides = [1, 1]} : vector<1x384xf32> to vector<1x128xf32>
    %305 = vector.extract_strided_slice %303 {offsets = [0, 0], sizes = [1, 128], strides = [1, 1]} : vector<1x384xf32> to vector<1x128xf32>
    %306 = arith.addf %304, %305 : vector<1x128xf32>
    %307 = arith.negf %306 : vector<1x128xf32>
    %308 = math.exp %307 : vector<1x128xf32>
    %cst_115 = arith.constant 1.000000e+00 : f32
    %309 = vector.broadcast %cst_115 : f32 to vector<1x128xf32>
    %310 = arith.addf %309, %308 : vector<1x128xf32>
    %311 = arith.divf %309, %310 : vector<1x128xf32>
    %312 = vector.extract_strided_slice %299 {offsets = [0, 128], sizes = [1, 128], strides = [1, 1]} : vector<1x384xf32> to vector<1x128xf32>
    %313 = vector.extract_strided_slice %303 {offsets = [0, 128], sizes = [1, 128], strides = [1, 1]} : vector<1x384xf32> to vector<1x128xf32>
    %314 = arith.addf %312, %313 : vector<1x128xf32>
    %315 = arith.negf %314 : vector<1x128xf32>
    %316 = math.exp %315 : vector<1x128xf32>
    %cst_116 = arith.constant 1.000000e+00 : f32
    %317 = vector.broadcast %cst_116 : f32 to vector<1x128xf32>
    %318 = arith.addf %317, %316 : vector<1x128xf32>
    %319 = arith.divf %317, %318 : vector<1x128xf32>
    %320 = vector.extract_strided_slice %299 {offsets = [0, 256], sizes = [1, 128], strides = [1, 1]} : vector<1x384xf32> to vector<1x128xf32>
    %321 = vector.extract_strided_slice %303 {offsets = [0, 256], sizes = [1, 128], strides = [1, 1]} : vector<1x384xf32> to vector<1x128xf32>
    %322 = arith.mulf %311, %321 : vector<1x128xf32>
    %323 = arith.addf %320, %322 : vector<1x128xf32>
    %324 = math.tanh %323 : vector<1x128xf32>
    %cst_117 = arith.constant 1.000000e+00 : f32
    %325 = vector.broadcast %cst_117 : f32 to vector<1x128xf32>
    %326 = arith.subf %325, %319 : vector<1x128xf32>
    %327 = arith.mulf %326, %324 : vector<1x128xf32>
    %328 = arith.mulf %319, %295 : vector<1x128xf32>
    %329 = arith.addf %327, %328 : vector<1x128xf32>
    %330 = arith.index_cast %c7_i32_108 : i32 to index
    %c0_118 = arith.constant 0 : index
    %331 = vector.load %arg7[%330, %c0_118] : memref<8x128xf32, #tpu.memory_space<vmem>>, vector<1x128xf32>
    tpu.vector_store %arg7[%330, %c0_118], %329 {strides = array<i32>} : memref<8x128xf32, #tpu.memory_space<vmem>>, vector<1x128xf32>,
    %c8_i32_119 = arith.constant 8 : i32
    return
  }
}

</mosaic_0001>

<llo_original>
// kernel: tpu_custom_call.1
$region0: #{tpu_custom_call.1}
  #allocation0 [shape = 'u32[]', space=smem, size = 0x4, offset = 0x4, fixed_abs, tag = 'smem constant byte address 0x4 - core index']
  #allocation1 [shape = 'u32[144,128]{1,0:T(1,128)}', space=vmem, size = 0x12000, scoped, tag = 'internal scratch']
  #allocation2 [shape = 'f32[8,128]{1,0:T(8,128)}', space=vmem, size = 0x1000, scoped, tag = 'scratch operand']
  #allocation3 [shape = 'f32[8,384]{1,0:T(8,128)}', space=vmem, size = 0x3000, scoped, tag = 'scratch operand']
  %s0 = inlined_call_operand.hbm [shape: s32[8], index: 0, kind: input, shape index: {}]
  %s1 = inlined_call_operand.hbm [shape: f32[16,128], index: 1, kind: input, shape index: {}]
  %s2 = inlined_call_operand.vmem [shape: f32[1,128], index: 2, kind: input, shape index: {}]
  %s3 = inlined_call_operand.hbm [shape: f32[128,384], index: 3, kind: input, shape index: {}]
  %s4 = inlined_call_operand.hbm [shape: f32[128,384], index: 4, kind: input, shape index: {}]
  %s5 = inlined_call_operand.vmem [shape: f32[1,384], index: 5, kind: input, shape index: {}]
  %s6 = inlined_call_operand.vmem [shape: f32[1,384], index: 6, kind: input, shape index: {}]
  %s7 = inlined_call_operand.hbm [shape: f32[8,128], index: 7, kind: output, shape index: {}]
  %s8 = sld [smem:[#allocation0]]
  $region54: #{tpu_custom_call.1} parent=0
    _
  %s10 = ssub.s32 1, %s8
  %s11 = scalar_select 0, %s10, %s8
  $region1: #{tpu_custom_call.1} parent=0
    #allocation4 [shape = 'u8[512]{0}', space=smem, size = 0x200, scoped, tag = 'input window, operand 0, single buffered']
    #allocation5 [shape = 's32[1]{0}', space=sflag, size = 0x4, scoped, tag = 'scoped memory for tpu_custom_call.1']
    #allocation6 [shape = 's32[1]{0}', space=sflag, size = 0x4, scoped, tag = 'scoped memory for tpu_custom_call.1']
    #allocation7 [shape = 's32[1]{0}', space=sflag, size = 0x4, scoped, tag = 'scoped memory for tpu_custom_call.1']
    #allocation8 [shape = 'u8[8192]{0}', space=vmem, size = 0x2000, scoped, tag = 'input window, operand 1, single buffered']
    #allocation9 [shape = 'u8[196608]{0}', space=vmem, size = 0x30000, scoped, tag = 'input window, operand 3, single buffered']
    #allocation10 [shape = 's32[1]{0}', space=sflag, size = 0x4, scoped, tag = 'scoped memory for tpu_custom_call.1']
    #allocation11 [shape = 'u8[196608]{0}', space=vmem, size = 0x30000, scoped, tag = 'input window, operand 4, single buffered']
    #allocation12 [shape = 'u8[4096]{0}', space=vmem, size = 0x1000, scoped, tag = 'output window, operand 0, single buffered']
    %12 = vsyncpa [#allocation7], 0
    %13 = vsyncpa [#allocation5], 0
    %14 = vsyncpa [#allocation10], 0
    %15 = vsyncpa [#allocation6], 0
    // Predicated region
    $region2: #{tpu_custom_call.1} parent=1 // pred_check
      _
    $region3: #{tpu_custom_call.1} parent=1 // pred_check_branch
      %17 = sbr.rel (0) target = $region5
    $region4: #{tpu_custom_call.1} parent=1 // pred_region
      %s19 = ssub.s32 16, 16
      %20 = vsyncadd [#allocation7], %s19
      %23 = dma.hbm_to_smem %s0, 16, [#allocation4], [#allocation7]
    $region5: #{tpu_custom_call.1} parent=1 // pred_fallthru
      _
    // Predicated region
    $region6: #{tpu_custom_call.1} parent=1 // pred_check
      _
    $region7: #{tpu_custom_call.1} parent=1 // pred_check_branch
      %25 = sbr.rel (0) target = $region9
    $region8: #{tpu_custom_call.1} parent=1 // pred_region
      %s27 = ssub.s32 256, 256
      %28 = vsyncadd [#allocation5], %s27
      %s29 = sshll.u32 [#allocation8], 4
      %s30 = int_to_ptr.vmem [resolvable:$true] %s29
      %35 = dma.hbm_to_vmem [thread:$0]  %s1, 256, %s30, [#allocation5], 128, 128, 8
    $region9: #{tpu_custom_call.1} parent=1 // pred_fallthru
      _
    // Predicated region
    $region10: #{tpu_custom_call.1} parent=1 // pred_check
      _
    $region11: #{tpu_custom_call.1} parent=1 // pred_check_branch
      %37 = sbr.rel (0) target = $region13
    $region12: #{tpu_custom_call.1} parent=1 // pred_region
      _
    $region13: #{tpu_custom_call.1} parent=1 // pred_fallthru
      _
    // Predicated region
    $region14: #{tpu_custom_call.1} parent=1 // pred_check
      _
    $region15: #{tpu_custom_call.1} parent=1 // pred_check_branch
      %39 = sbr.rel (0) target = $region17
    $region16: #{tpu_custom_call.1} parent=1 // pred_region
      %s41 = ssub.s32 6144, 6144
      %42 = vsyncadd [#allocation10], %s41
      %s43 = sshll.u32 [#allocation9], 4
      %s44 = int_to_ptr.vmem [resolvable:$true] %s43
      %49 = dma.hbm_to_vmem [thread:$0]  %s3, 6144, %s44, [#allocation10], 384, 384, 24
    $region17: #{tpu_custom_call.1} parent=1 // pred_fallthru
      _
    // Predicated region
    $region18: #{tpu_custom_call.1} parent=1 // pred_check
      _
    $region19: #{tpu_custom_call.1} parent=1 // pred_check_branch
      %51 = sbr.rel (0) target = $region21
    $region20: #{tpu_custom_call.1} parent=1 // pred_region
      %s53 = ssub.s32 6144, 6144
      %54 = vsyncadd [#allocation10], %s53
      %s55 = sshll.u32 [#allocation11], 4
      %s56 = int_to_ptr.vmem [resolvable:$true] %s55
      %61 = dma.hbm_to_vmem [thread:$0]  %s4, 6144, %s56, [#allocation10], 384, 384, 24
    $region21: #{tpu_custom_call.1} parent=1 // pred_fallthru
      _
    // Predicated region
    $region22: #{tpu_custom_call.1} parent=1 // pred_check
      _
    $region23: #{tpu_custom_call.1} parent=1 // pred_check_branch
      %63 = sbr.rel (0) target = $region25
    $region24: #{tpu_custom_call.1} parent=1 // pred_region
      _
    $region25: #{tpu_custom_call.1} parent=1 // pred_fallthru
      _
    // Predicated region
    $region26: #{tpu_custom_call.1} parent=1 // pred_check
      _
    $region27: #{tpu_custom_call.1} parent=1 // pred_check_branch
      %65 = sbr.rel (0) target = $region29
    $region28: #{tpu_custom_call.1} parent=1 // pred_region
      _
    $region29: #{tpu_custom_call.1} parent=1 // pred_fallthru
      _
    // Predicated region
    $region30: #{tpu_custom_call.1} parent=1 // pred_check
      _
    $region31: #{tpu_custom_call.1} parent=1 // pred_check_branch
      %67 = sbr.rel (0) target = $region33
    $region32: #{tpu_custom_call.1} parent=1 // pred_region
      %68 = dma.done [#allocation7], 16
    $region33: #{tpu_custom_call.1} parent=1 // pred_fallthru
      _
    // Predicated region
    $region34: #{tpu_custom_call.1} parent=1 // pred_check
      _
    $region35: #{tpu_custom_call.1} parent=1 // pred_check_branch
      %70 = sbr.rel (0) target = $region37
    $region36: #{tpu_custom_call.1} parent=1 // pred_region
      %71 = dma.done [#allocation5], 256
    $region37: #{tpu_custom_call.1} parent=1 // pred_fallthru
      _
    // Predicated region
    $region38: #{tpu_custom_call.1} parent=1 // pred_check
      _
    $region39: #{tpu_custom_call.1} parent=1 // pred_check_branch
      %73 = sbr.rel (0) target = $region41
    $region40: #{tpu_custom_call.1} parent=1 // pred_region
      %74 = dma.done [#allocation10], 6144
    $region41: #{tpu_custom_call.1} parent=1 // pred_fallthru
      _
    // Predicated region
    $region42: #{tpu_custom_call.1} parent=1 // pred_check
      _
    $region43: #{tpu_custom_call.1} parent=1 // pred_check_branch
      %76 = sbr.rel (0) target = $region45
    $region44: #{tpu_custom_call.1} parent=1 // pred_region
      %77 = dma.done [#allocation10], 6144
    $region45: #{tpu_custom_call.1} parent=1 // pred_fallthru
      _
    %78 = sfence
    %79 = vst [vmem:[#allocation12] sm:$0xff] 0.0
    %80 = vst [vmem:[#allocation2] sm:$0xff] 0.0
    %s81 = sld [smem:[#allocation4]]
    %s82 = scalar_lea.vmem [#allocation8], %s81
    %v83 = vld [vmem:[%s82] sm:$0x1]
    %84 = vst [vmem:[#allocation2] sm:$0x1] %v83
    %s85 = sld [smem:[#allocation4 + $0x1]]
    %s86 = scalar_lea.vmem [#allocation8], %s85
    %v87 = vld [vmem:[%s86] sm:$0x1]
    %88 = vst [vmem:[#allocation2 + $0x1] sm:$0x1] %v87
    %s89 = sld [smem:[#allocation4 + $0x2]]
    %s90 = scalar_lea.vmem [#allocation8], %s89
    %v91 = vld [vmem:[%s90] sm:$0x1]
    %92 = vst [vmem:[#allocation2 + $0x2] sm:$0x1] %v91
    %s93 = sld [smem:[#allocation4 + $0x3]]
    %s94 = scalar_lea.vmem [#allocation8], %s93
    %v95 = vld [vmem:[%s94] sm:$0x1]
    %96 = vst [vmem:[#allocation2 + $0x3] sm:$0x1] %v95
    %s97 = sld [smem:[#allocation4 + $0x4]]
    %s98 = scalar_lea.vmem [#allocation8], %s97
    %v99 = vld [vmem:[%s98] sm:$0x1]
    %100 = vst [vmem:[#allocation2 + $0x4] sm:$0x1] %v99
    %s101 = sld [smem:[#allocation4 + $0x5]]
    %s102 = scalar_lea.vmem [#allocation8], %s101
    %v103 = vld [vmem:[%s102] sm:$0x1]
    %104 = vst [vmem:[#allocation2 + $0x5] sm:$0x1] %v103
    %s105 = sld [smem:[#allocation4 + $0x6]]
    %s106 = scalar_lea.vmem [#allocation8], %s105
    %v107 = vld [vmem:[%s106] sm:$0x1]
    %108 = vst [vmem:[#allocation2 + $0x6] sm:$0x1] %v107
    %s109 = sld [smem:[#allocation4 + $0x7]]
    %s110 = scalar_lea.vmem [#allocation8], %s109
    %v111 = vld [vmem:[%s110] sm:$0x1]
    %112 = vst [vmem:[#allocation2 + $0x7] sm:$0x1] %v111
    %v113 = vld [vmem:[#allocation2] sm:$0xff]
    %v114 = vld [vmem:[#allocation9] sm:$0xff]
    %v115 = vld [vmem:[#allocation9 + $0x8] sm:$0xff]
    %v116 = vld [vmem:[#allocation9 + $0x10] sm:$0xff]
    %v117 = vld [vmem:[#allocation9 + $0x18] sm:$0xff]
    %v118 = vld [vmem:[#allocation9 + $0x20] sm:$0xff]
    %v119 = vld [vmem:[#allocation9 + $0x28] sm:$0xff]
    %v120 = vld [vmem:[#allocation9 + $0x30] sm:$0xff]
    %v121 = vld [vmem:[#allocation9 + $0x38] sm:$0xff]
    %v122 = vld [vmem:[#allocation9 + $0x40] sm:$0xff]
    %v123 = vld [vmem:[#allocation9 + $0x48] sm:$0xff]
    %v124 = vld [vmem:[#allocation9 + $0x50] sm:$0xff]
    %v125 = vld [vmem:[#allocation9 + $0x58] sm:$0xff]
    %v126 = vld [vmem:[#allocation9 + $0x60] sm:$0xff]
    %v127 = vld [vmem:[#allocation9 + $0x68] sm:$0xff]
    %v128 = vld [vmem:[#allocation9 + $0x70] sm:$0xff]
    %v129 = vld [vmem:[#allocation9 + $0x78] sm:$0xff]
    %v130 = vld [vmem:[#allocation9 + $0x80] sm:$0xff]
    %v131 = vld [vmem:[#allocation9 + $0x88] sm:$0xff]
    %v132 = vld [vmem:[#allocation9 + $0x90] sm:$0xff]
    %v133 = vld [vmem:[#allocation9 + $0x98] sm:$0xff]
    %v134 = vld [vmem:[#allocation9 + $0xa0] sm:$0xff]
    %v135 = vld [vmem:[#allocation9 + $0xa8] sm:$0xff]
    %v136 = vld [vmem:[#allocation9 + $0xb0] sm:$0xff]
    %v137 = vld [vmem:[#allocation9 + $0xb8] sm:$0xff]
    %v138 = vld [vmem:[#allocation9 + $0xc0] sm:$0xff]
    %v139 = vld [vmem:[#allocation9 + $0xc8] sm:$0xff]
    %v140 = vld [vmem:[#allocation9 + $0xd0] sm:$0xff]
    %v141 = vld [vmem:[#allocation9 + $0xd8] sm:$0xff]
    %v142 = vld [vmem:[#allocation9 + $0xe0] sm:$0xff]
    %v143 = vld [vmem:[#allocation9 + $0xe8] sm:$0xff]
    %v144 = vld [vmem:[#allocation9 + $0xf0] sm:$0xff]
    %v145 = vld [vmem:[#allocation9 + $0xf8] sm:$0xff]
    %v146 = vld [vmem:[#allocation9 + $0x100] sm:$0xff]
    %v147 = vld [vmem:[#allocation9 + $0x108] sm:$0xff]
    %v148 = vld [vmem:[#allocation9 + $0x110] sm:$0xff]
    %v149 = vld [vmem:[#allocation9 + $0x118] sm:$0xff]
    %v150 = vld [vmem:[#allocation9 + $0x120] sm:$0xff]
    %v151 = vld [vmem:[#allocation9 + $0x128] sm:$0xff]
    %v152 = vld [vmem:[#allocation9 + $0x130] sm:$0xff]
    %v153 = vld [vmem:[#allocation9 + $0x138] sm:$0xff]
    %v154 = vld [vmem:[#allocation9 + $0x140] sm:$0xff]
    %v155 = vld [vmem:[#allocation9 + $0x148] sm:$0xff]
    %v156 = vld [vmem:[#allocation9 + $0x150] sm:$0xff]
    %v157 = vld [vmem:[#allocation9 + $0x158] sm:$0xff]
    %v158 = vld [vmem:[#allocation9 + $0x160] sm:$0xff]
    %v159 = vld [vmem:[#allocation9 + $0x168] sm:$0xff]
    %v160 = vld [vmem:[#allocation9 + $0x170] sm:$0xff]
    %v161 = vld [vmem:[#allocation9 + $0x178] sm:$0xff]
    %v162 = vld [vmem:[%s5] sm:$0x7]
    %v164 = vlaneseq
    %v165 = vshrl.u32 %v164, 7
    %v166 = vsub.s32 0, %v165
    %v167 = vrot.slane %v162, %v166
    %v168 = vlaneseq
    %v169 = vshrl.u32 %v168, 7
    %v170 = vsub.s32 1, %v169
    %v171 = vrot.slane %v162, %v170
    %v172 = vlaneseq
    %v173 = vshrl.u32 %v172, 7
    %v174 = vsub.s32 2, %v173
    %v175 = vrot.slane %v162, %v174
    %179 = vmatprep.subr.mxu0 %v115
    %180 = vmatpush1.msra.mxu0 %v114
    %181 = vmatprep.subr.mxu0 %v118
    %182 = vmatpush1.msra.mxu0 %v117
    %183 = vmatprep.subr.mxu0 %v121
    %184 = vmatpush1.msra.mxu0 %v120
    %185 = vmatprep.subr.mxu0 %v124
    %186 = vmatpush1.msra.mxu0 %v123
    %187 = vmatprep.subr.mxu0 %v127
    %188 = vmatpush1.msra.mxu0 %v126
    %189 = vmatprep.subr.mxu0 %v130
    %190 = vmatpush1.msra.mxu0 %v129
    %191 = vmatprep.subr.mxu0 %v133
    %192 = vmatpush1.msra.mxu0 %v132
    %193 = vmatprep.subr.mxu0 %v136
    %194 = vmatpush1.msra.mxu0 %v135
    %195 = vmatprep.subr.mxu0 %v139
    %196 = vmatpush1.msra.mxu0 %v138
    %197 = vmatprep.subr.mxu0 %v142
    %198 = vmatpush1.msra.mxu0 %v141
    %199 = vmatprep.subr.mxu0 %v145
    %200 = vmatpush1.msra.mxu0 %v144
    %201 = vmatprep.subr.mxu0 %v148
    %202 = vmatpush1.msra.mxu0 %v147
    %203 = vmatprep.subr.mxu0 %v151
    %204 = vmatpush1.msra.mxu0 %v150
    %205 = vmatprep.subr.mxu0 %v154
    %206 = vmatpush1.msra.mxu0 %v153
    %207 = vmatprep.subr.mxu0 %v157
    %208 = vmatpush1.msra.mxu0 %v156
    %209 = vmatprep.subr.mxu0 %v160
    %210 = vmatpush1.msra.mxu0 %v159
    %211 = vmatprep.subr.mxu0 0.0
    %212 = vmatpush1.msra.mxu0 0.0
    %213 = vmatprep.subr.mxu0 0.0
    %214 = vmatpush1.msra.mxu0 0.0
    %215 = vmatprep.subr.mxu0 0.0
    %216 = vmatpush1.msra.mxu0 0.0
    %217 = vmatprep.subr.mxu0 0.0
    %218 = vmatpush1.msra.mxu0 0.0
    %219 = vmatprep.subr.mxu0 0.0
    %220 = vmatpush1.msra.mxu0 0.0
    %221 = vmatprep.subr.mxu0 0.0
    %222 = vmatpush1.msra.mxu0 0.0
    %223 = vmatprep.subr.mxu0 0.0
    %224 = vmatpush1.msra.mxu0 0.0
    %225 = vmatprep.subr.mxu0 0.0
    %226 = vmatpush1.msra.mxu0 0.0
    %227 = vmatprep.subr.mxu0 0.0
    %228 = vmatpush1.msra.mxu0 0.0
    %229 = vmatprep.subr.mxu0 0.0
    %230 = vmatpush1.msra.mxu0 0.0
    %231 = vmatprep.subr.mxu0 0.0
    %232 = vmatpush1.msra.mxu0 0.0
    %233 = vmatprep.subr.mxu0 0.0
    %234 = vmatpush1.msra.mxu0 0.0
    %235 = vmatprep.subr.mxu0 0.0
    %236 = vmatpush1.msra.mxu0 0.0
    %237 = vmatprep.subr.mxu0 0.0
    %238 = vmatpush1.msra.mxu0 0.0
    %239 = vmatprep.subr.mxu0 0.0
    %240 = vmatpush1.msra.mxu0 0.0
    %241 = vmatprep.subr.mxu0 0.0
    %242 = vmatpush1.msra.mxu0 0.0
    %243 = vmatprep.mubr.f32.mxu0 0.0
    %244 = vmatmul.mubr.f32.gmra.mrb[0].mxu0 %v113
    %v245 = vpop.f32.mrb[0].mxu0
    %v246 = vadd.f32 %v167, %v245
    %v247 = vpop.f32.mrb[0].mxu0
    %v248 = vadd.f32 %v171, %v247
    %249 = vdwg.mxu0
    %250 = vmatprep.subr.mxu0 0.0
    %251 = vmatpush1.msra.mxu0 %v116
    %252 = vmatprep.subr.mxu0 0.0
    %253 = vmatpush1.msra.mxu0 %v119
    %254 = vmatprep.subr.mxu0 0.0
    %255 = vmatpush1.msra.mxu0 %v122
    %256 = vmatprep.subr.mxu0 0.0
    %257 = vmatpush1.msra.mxu0 %v125
    %258 = vmatprep.subr.mxu0 0.0
    %259 = vmatpush1.msra.mxu0 %v128
    %260 = vmatprep.subr.mxu0 0.0
    %261 = vmatpush1.msra.mxu0 %v131
    %262 = vmatprep.subr.mxu0 0.0
    %263 = vmatpush1.msra.mxu0 %v134
    %264 = vmatprep.subr.mxu0 0.0
    %265 = vmatpush1.msra.mxu0 %v137
    %266 = vmatprep.subr.mxu0 0.0
    %267 = vmatpush1.msra.mxu0 %v140
    %268 = vmatprep.subr.mxu0 0.0
    %269 = vmatpush1.msra.mxu0 %v143
    %270 = vmatprep.subr.mxu0 0.0
    %271 = vmatpush1.msra.mxu0 %v146
    %272 = vmatprep.subr.mxu0 0.0
    %273 = vmatpush1.msra.mxu0 %v149
    %274 = vmatprep.subr.mxu0 0.0
    %275 = vmatpush1.msra.mxu0 %v152
    %276 = vmatprep.subr.mxu0 0.0
    %277 = vmatpush1.msra.mxu0 %v155
    %278 = vmatprep.subr.mxu0 0.0
    %279 = vmatpush1.msra.mxu0 %v158
    %280 = vmatprep.subr.mxu0 0.0
    %281 = vmatpush1.msra.mxu0 %v161
    %282 = vmatprep.subr.mxu0 0.0
    %283 = vmatpush1.msra.mxu0 0.0
    %284 = vmatprep.subr.mxu0 0.0
    %285 = vmatpush1.msra.mxu0 0.0
    %286 = vmatprep.subr.mxu0 0.0
    %287 = vmatpush1.msra.mxu0 0.0
    %288 = vmatprep.subr.mxu0 0.0
    %289 = vmatpush1.msra.mxu0 0.0
    %290 = vmatprep.subr.mxu0 0.0
    %291 = vmatpush1.msra.mxu0 0.0
    %292 = vmatprep.subr.mxu0 0.0
    %293 = vmatpush1.msra.mxu0 0.0
    %294 = vmatprep.subr.mxu0 0.0
    %295 = vmatpush1.msra.mxu0 0.0
    %296 = vmatprep.subr.mxu0 0.0
    %297 = vmatpush1.msra.mxu0 0.0
    %298 = vmatprep.subr.mxu0 0.0
    %299 = vmatpush1.msra.mxu0 0.0
    %300 = vmatprep.subr.mxu0 0.0
    %301 = vmatpush1.msra.mxu0 0.0
    %302 = vmatprep.subr.mxu0 0.0
    %303 = vmatpush1.msra.mxu0 0.0
    %304 = vmatprep.subr.mxu0 0.0
    %305 = vmatpush1.msra.mxu0 0.0
    %306 = vmatprep.subr.mxu0 0.0
    %307 = vmatpush1.msra.mxu0 0.0
    %308 = vmatprep.subr.mxu0 0.0
    %309 = vmatpush1.msra.mxu0 0.0
    %310 = vmatprep.subr.mxu0 0.0
    %311 = vmatpush1.msra.mxu0 0.0
    %312 = vmatprep.subr.mxu0 0.0
    %313 = vmatpush1.msra.mxu0 0.0
    %314 = vmatprep.mubr.f32.mxu0 0.0
    %315 = vmatmul.mubr.f32.gmra.mrb[0].mxu0 %v113
    %v316 = vpop.f32.mrb[0].mxu0
    %v317 = vadd.f32 %v175, %v316
    %v318 = vpop.f32.mrb[0].mxu0
    %319 = vdwg.mxu0
    %320 = vst [vmem:[#allocation3] sm:$0xff] %v246
    %321 = vst [vmem:[#allocation3 + $0x8] sm:$0xff] %v248
    %322 = vst [vmem:[#allocation3 + $0x10] sm:$0xff] %v317
    %v323 = vld [vmem:[%s2] sm:$0x1]
    %v324 = vld [vmem:[#allocation3] ss:$8 sm:$0x7]
    %v325 = vld [vmem:[#allocation11] sm:$0xff]
    %v326 = vld [vmem:[#allocation11 + $0x8] sm:$0xff]
    %v327 = vld [vmem:[#allocation11 + $0x10] sm:$0xff]
    %v328 = vld [vmem:[#allocation11 + $0x18] sm:$0xff]
    %v329 = vld [vmem:[#allocation11 + $0x20] sm:$0xff]
    %v330 = vld [vmem:[#allocation11 + $0x28] sm:$0xff]
    %v331 = vld [vmem:[#allocation11 + $0x30] sm:$0xff]
    %v332 = vld [vmem:[#allocation11 + $0x38] sm:$0xff]
    %v333 = vld [vmem:[#allocation11 + $0x40] sm:$0xff]
    %v334 = vld [vmem:[#allocation11 + $0x48] sm:$0xff]
    %v335 = vld [vmem:[#allocation11 + $0x50] sm:$0xff]
    %v336 = vld [vmem:[#allocation11 + $0x58] sm:$0xff]
    %v337 = vld [vmem:[#allocation11 + $0x60] sm:$0xff]
    %v338 = vld [vmem:[#allocation11 + $0x68] sm:$0xff]
    %v339 = vld [vmem:[#allocation11 + $0x70] sm:$0xff]
    %v340 = vld [vmem:[#allocation11 + $0x78] sm:$0xff]
    %v341 = vld [vmem:[#allocation11 + $0x80] sm:$0xff]
    %v342 = vld [vmem:[#allocation11 + $0x88] sm:$0xff]
    %v343 = vld [vmem:[#allocation11 + $0x90] sm:$0xff]
    %v344 = vld [vmem:[#allocation11 + $0x98] sm:$0xff]
    %v345 = vld [vmem:[#allocation11 + $0xa0] sm:$0xff]
    %v346 = vld [vmem:[#allocation11 + $0xa8] sm:$0xff]
    %v347 = vld [vmem:[#allocation11 + $0xb0] sm:$0xff]
    %v348 = vld [vmem:[#allocation11 + $0xb8] sm:$0xff]
    %v349 = vld [vmem:[#allocation11 + $0xc0] sm:$0xff]
    %v350 = vld [vmem:[#allocation11 + $0xc8] sm:$0xff]
    %v351 = vld [vmem:[#allocation11 + $0xd0] sm:$0xff]
    %v352 = vld [vmem:[#allocation11 + $0xd8] sm:$0xff]
    %v353 = vld [vmem:[#allocation11 + $0xe0] sm:$0xff]
    %v354 = vld [vmem:[#allocation11 + $0xe8] sm:$0xff]
    %v355 = vld [vmem:[#allocation11 + $0xf0] sm:$0xff]
    %v356 = vld [vmem:[#allocation11 + $0xf8] sm:$0xff]
    %v357 = vld [vmem:[#allocation11 + $0x100] sm:$0xff]
    %v358 = vld [vmem:[#allocation11 + $0x108] sm:$0xff]
    %v359 = vld [vmem:[#allocation11 + $0x110] sm:$0xff]
    %v360 = vld [vmem:[#allocation11 + $0x118] sm:$0xff]
    %v361 = vld [vmem:[#allocation11 + $0x120] sm:$0xff]
    %v362 = vld [vmem:[#allocation11 + $0x128] sm:$0xff]
    %v363 = vld [vmem:[#allocation11 + $0x130] sm:$0xff]
    %v364 = vld [vmem:[#allocation11 + $0x138] sm:$0xff]
    %v365 = vld [vmem:[#allocation11 + $0x140] sm:$0xff]
    %v366 = vld [vmem:[#allocation11 + $0x148] sm:$0xff]
    %v367 = vld [vmem:[#allocation11 + $0x150] sm:$0xff]
    %v368 = vld [vmem:[#allocation11 + $0x158] sm:$0xff]
    %v369 = vld [vmem:[#allocation11 + $0x160] sm:$0xff]
    %v370 = vld [vmem:[#allocation11 + $0x168] sm:$0xff]
    %v371 = vld [vmem:[#allocation11 + $0x170] sm:$0xff]
    %v372 = vld [vmem:[#allocation11 + $0x178] sm:$0xff]
    %v373 = vld [vmem:[%s6] sm:$0x7]
    %v375 = vlaneseq
    %v376 = vshrl.u32 %v375, 7
    %v377 = vsub.s32 0, %v376
    %v378 = vrot.slane %v373, %v377
    %v379 = vlaneseq
    %v380 = vshrl.u32 %v379, 7
    %v381 = vsub.s32 1, %v380
    %v382 = vrot.slane %v373, %v381
    %v383 = vlaneseq
    %v384 = vshrl.u32 %v383, 7
    %v385 = vsub.s32 2, %v384
    %v386 = vrot.slane %v373, %v385
    %390 = vmatprep.subr.mxu0 %v326
    %391 = vmatpush1.msra.mxu0 %v325
    %392 = vmatprep.subr.mxu0 %v329
    %393 = vmatpush1.msra.mxu0 %v328
    %394 = vmatprep.subr.mxu0 %v332
    %395 = vmatpush1.msra.mxu0 %v331
    %396 = vmatprep.subr.mxu0 %v335
    %397 = vmatpush1.msra.mxu0 %v334
    %398 = vmatprep.subr.mxu0 %v338
    %399 = vmatpush1.msra.mxu0 %v337
    %400 = vmatprep.subr.mxu0 %v341
    %401 = vmatpush1.msra.mxu0 %v340
    %402 = vmatprep.subr.mxu0 %v344
    %403 = vmatpush1.msra.mxu0 %v343
    %404 = vmatprep.subr.mxu0 %v347
    %405 = vmatpush1.msra.mxu0 %v346
    %406 = vmatprep.subr.mxu0 %v350
    %407 = vmatpush1.msra.mxu0 %v349
    %408 = vmatprep.subr.mxu0 %v353
    %409 = vmatpush1.msra.mxu0 %v352
    %410 = vmatprep.subr.mxu0 %v356
    %411 = vmatpush1.msra.mxu0 %v355
    %412 = vmatprep.subr.mxu0 %v359
    %413 = vmatpush1.msra.mxu0 %v358
    %414 = vmatprep.subr.mxu0 %v362
    %415 = vmatpush1.msra.mxu0 %v361
    %416 = vmatprep.subr.mxu0 %v365
    %417 = vmatpush1.msra.mxu0 %v364
    %418 = vmatprep.subr.mxu0 %v368
    %419 = vmatpush1.msra.mxu0 %v367
    %420 = vmatprep.subr.mxu0 %v371
    %421 = vmatpush1.msra.mxu0 %v370
    %422 = vmatprep.subr.mxu0 0.0
    %423 = vmatpush1.msra.mxu0 0.0
    %424 = vmatprep.subr.mxu0 0.0
    %425 = vmatpush1.msra.mxu0 0.0
    %426 = vmatprep.subr.mxu0 0.0
    %427 = vmatpush1.msra.mxu0 0.0
    %428 = vmatprep.subr.mxu0 0.0
    %429 = vmatpush1.msra.mxu0 0.0
    %430 = vmatprep.subr.mxu0 0.0
    %431 = vmatpush1.msra.mxu0 0.0
    %432 = vmatprep.subr.mxu0 0.0
    %433 = vmatpush1.msra.mxu0 0.0
    %434 = vmatprep.subr.mxu0 0.0
    %435 = vmatpush1.msra.mxu0 0.0
    %436 = vmatprep.subr.mxu0 0.0
    %437 = vmatpush1.msra.mxu0 0.0
    %438 = vmatprep.subr.mxu0 0.0
    %439 = vmatpush1.msra.mxu0 0.0
    %440 = vmatprep.subr.mxu0 0.0
    %441 = vmatpush1.msra.mxu0 0.0
    %442 = vmatprep.subr.mxu0 0.0
    %443 = vmatpush1.msra.mxu0 0.0
    %444 = vmatprep.subr.mxu0 0.0
    %445 = vmatpush1.msra.mxu0 0.0
    %446 = vmatprep.subr.mxu0 0.0
    %447 = vmatpush1.msra.mxu0 0.0
    %448 = vmatprep.subr.mxu0 0.0
    %449 = vmatpush1.msra.mxu0 0.0
    %450 = vmatprep.subr.mxu0 0.0
    %451 = vmatpush1.msra.mxu0 0.0
    %452 = vmatprep.subr.mxu0 0.0
    %453 = vmatpush1.msra.mxu0 0.0
    %454 = vmatprep.mubr.f32.mxu0 0.0
    %455 = vmatmul.mubr.f32.gmra.mrb[0].mxu0 %v323
    %v456 = vpop.f32.mrb[0].mxu0
    %v457 = vadd.f32 %v378, %v456
    %v458 = vpop.f32.mrb[0].mxu0
    %v459 = vadd.f32 %v382, %v458
    %460 = vdwg.mxu0
    %461 = vmatprep.subr.mxu0 0.0
    %462 = vmatpush1.msra.mxu0 %v327
    %463 = vmatprep.subr.mxu0 0.0
    %464 = vmatpush1.msra.mxu0 %v330
    %465 = vmatprep.subr.mxu0 0.0
    %466 = vmatpush1.msra.mxu0 %v333
    %467 = vmatprep.subr.mxu0 0.0
    %468 = vmatpush1.msra.mxu0 %v336
    %469 = vmatprep.subr.mxu0 0.0
    %470 = vmatpush1.msra.mxu0 %v339
    %471 = vmatprep.subr.mxu0 0.0
    %472 = vmatpush1.msra.mxu0 %v342
    %473 = vmatprep.subr.mxu0 0.0
    %474 = vmatpush1.msra.mxu0 %v345
    %475 = vmatprep.subr.mxu0 0.0
    %476 = vmatpush1.msra.mxu0 %v348
    %477 = vmatprep.subr.mxu0 0.0
    %478 = vmatpush1.msra.mxu0 %v351
    %479 = vmatprep.subr.mxu0 0.0
    %480 = vmatpush1.msra.mxu0 %v354
    %481 = vmatprep.subr.mxu0 0.0
    %482 = vmatpush1.msra.mxu0 %v357
    %483 = vmatprep.subr.mxu0 0.0
    %484 = vmatpush1.msra.mxu0 %v360
    %485 = vmatprep.subr.mxu0 0.0
    %486 = vmatpush1.msra.mxu0 %v363
    %487 = vmatprep.subr.mxu0 0.0
    %488 = vmatpush1.msra.mxu0 %v366
    %489 = vmatprep.subr.mxu0 0.0
    %490 = vmatpush1.msra.mxu0 %v369
    %491 = vmatprep.subr.mxu0 0.0
    %492 = vmatpush1.msra.mxu0 %v372
    %493 = vmatprep.subr.mxu0 0.0
    %494 = vmatpush1.msra.mxu0 0.0
    %495 = vmatprep.subr.mxu0 0.0
    %496 = vmatpush1.msra.mxu0 0.0
    %497 = vmatprep.subr.mxu0 0.0
    %498 = vmatpush1.msra.mxu0 0.0
    %499 = vmatprep.subr.mxu0 0.0
    %500 = vmatpush1.msra.mxu0 0.0
    %501 = vmatprep.subr.mxu0 0.0
    %502 = vmatpush1.msra.mxu0 0.0
    %503 = vmatprep.subr.mxu0 0.0
    %504 = vmatpush1.msra.mxu0 0.0
    %505 = vmatprep.subr.mxu0 0.0
    %506 = vmatpush1.msra.mxu0 0.0
    %507 = vmatprep.subr.mxu0 0.0
    %508 = vmatpush1.msra.mxu0 0.0
    %509 = vmatprep.subr.mxu0 0.0
    %510 = vmatpush1.msra.mxu0 0.0
    %511 = vmatprep.subr.mxu0 0.0
    %512 = vmatpush1.msra.mxu0 0.0
    %513 = vmatprep.subr.mxu0 0.0
    %514 = vmatpush1.msra.mxu0 0.0
    %515 = vmatprep.subr.mxu0 0.0
    %516 = vmatpush1.msra.mxu0 0.0
    %517 = vmatprep.subr.mxu0 0.0
    %518 = vmatpush1.msra.mxu0 0.0
    %519 = vmatprep.subr.mxu0 0.0
    %520 = vmatpush1.msra.mxu0 0.0
    %521 = vmatprep.subr.mxu0 0.0
    %522 = vmatpush1.msra.mxu0 0.0
    %523 = vmatprep.subr.mxu0 0.0
    %524 = vmatpush1.msra.mxu0 0.0
    %525 = vmatprep.mubr.f32.mxu0 0.0
    %526 = vmatmul.mubr.f32.gmra.mrb[0].mxu0 %v323
    %v527 = vpop.f32.mrb[0].mxu0
    %v528 = vadd.f32 %v386, %v527
    %v529 = vpop.f32.mrb[0].mxu0
    %530 = vdwg.mxu0
    %v531 = vadd.f32 %v324, %v457
    %v532 = vxor.u32 %v531, 2147483648
    %v533 = vmul.f32 %v532, 1.442695
    %v534 = vpow.pop %v533
    %v535 = vadd.f32 %v534, 1.0
    %v536 = vrcp.pop %v535
    %v537 = vmul.f32 1.0, %v536
    %v539 = vrot.slane %v324, 1
    %v541 = vadd.f32 %v539, %v459
    %v542 = vxor.u32 %v541, 2147483648
    %v543 = vmul.f32 %v542, 1.442695
    %v544 = vpow.pop %v543
    %v545 = vadd.f32 %v544, 1.0
    %v546 = vrcp.pop %v545
    %v547 = vmul.f32 1.0, %v546
    %v548 = vmul.f32 %v537, %v528
    %v549 = vrot.slane %v324, 2
    %v551 = vadd.f32 %v549, %v548
    %v552 = vtanh.pop %v551
    %v553 = vsub.f32 1.0, %v547
    %v554 = vmul.f32 %v553, %v552
    %v555 = vmul.f32 %v547, %v323
    %v556 = vadd.f32 %v554, %v555
    %557 = vst [vmem:[#allocation12] sm:$0x1] %v556
    %s558 = scalar_lea.vmem [#allocation3], 1
    %v559 = vld [vmem:[%s558] ss:$8 sm:$0x7]
    %v560 = vld [vmem:[#allocation11] sm:$0xff]
    %v561 = vld [vmem:[#allocation11 + $0x8] sm:$0xff]
    %v562 = vld [vmem:[#allocation11 + $0x10] sm:$0xff]
    %v563 = vld [vmem:[#allocation11 + $0x18] sm:$0xff]
    %v564 = vld [vmem:[#allocation11 + $0x20] sm:$0xff]
    %v565 = vld [vmem:[#allocation11 + $0x28] sm:$0xff]
    %v566 = vld [vmem:[#allocation11 + $0x30] sm:$0xff]
    %v567 = vld [vmem:[#allocation11 + $0x38] sm:$0xff]
    %v568 = vld [vmem:[#allocation11 + $0x40] sm:$0xff]
    %v569 = vld [vmem:[#allocation11 + $0x48] sm:$0xff]
    %v570 = vld [vmem:[#allocation11 + $0x50] sm:$0xff]
    %v571 = vld [vmem:[#allocation11 + $0x58] sm:$0xff]
    %v572 = vld [vmem:[#allocation11 + $0x60] sm:$0xff]
    %v573 = vld [vmem:[#allocation11 + $0x68] sm:$0xff]
    %v574 = vld [vmem:[#allocation11 + $0x70] sm:$0xff]
    %v575 = vld [vmem:[#allocation11 + $0x78] sm:$0xff]
    %v576 = vld [vmem:[#allocation11 + $0x80] sm:$0xff]
    %v577 = vld [vmem:[#allocation11 + $0x88] sm:$0xff]
    %v578 = vld [vmem:[#allocation11 + $0x90] sm:$0xff]
    %v579 = vld [vmem:[#allocation11 + $0x98] sm:$0xff]
    %v580 = vld [vmem:[#allocation11 + $0xa0] sm:$0xff]
    %v581 = vld [vmem:[#allocation11 + $0xa8] sm:$0xff]
    %v582 = vld [vmem:[#allocation11 + $0xb0] sm:$0xff]
    %v583 = vld [vmem:[#allocation11 + $0xb8] sm:$0xff]
    %v584 = vld [vmem:[#allocation11 + $0xc0] sm:$0xff]
    %v585 = vld [vmem:[#allocation11 + $0xc8] sm:$0xff]
    %v586 = vld [vmem:[#allocation11 + $0xd0] sm:$0xff]
    %v587 = vld [vmem:[#allocation11 + $0xd8] sm:$0xff]
    %v588 = vld [vmem:[#allocation11 + $0xe0] sm:$0xff]
    %v589 = vld [vmem:[#allocation11 + $0xe8] sm:$0xff]
    %v590 = vld [vmem:[#allocation11 + $0xf0] sm:$0xff]
    %v591 = vld [vmem:[#allocation11 + $0xf8] sm:$0xff]
    %v592 = vld [vmem:[#allocation11 + $0x100] sm:$0xff]
    %v593 = vld [vmem:[#allocation11 + $0x108] sm:$0xff]
    %v594 = vld [vmem:[#allocation11 + $0x110] sm:$0xff]
    %v595 = vld [vmem:[#allocation11 + $0x118] sm:$0xff]
    %v596 = vld [vmem:[#allocation11 + $0x120] sm:$0xff]
    %v597 = vld [vmem:[#allocation11 + $0x128] sm:$0xff]
    %v598 = vld [vmem:[#allocation11 + $0x130] sm:$0xff]
    %v599 = vld [vmem:[#allocation11 + $0x138] sm:$0xff]
    %v600 = vld [vmem:[#allocation11 + $0x140] sm:$0xff]
    %v601 = vld [vmem:[#allocation11 + $0x148] sm:$0xff]
    %v602 = vld [vmem:[#allocation11 + $0x150] sm:$0xff]
    %v603 = vld [vmem:[#allocation11 + $0x158] sm:$0xff]
    %v604 = vld [vmem:[#allocation11 + $0x160] sm:$0xff]
    %v605 = vld [vmem:[#allocation11 + $0x168] sm:$0xff]
    %v606 = vld [vmem:[#allocation11 + $0x170] sm:$0xff]
    %v607 = vld [vmem:[#allocation11 + $0x178] sm:$0xff]
    %v608 = vld [vmem:[%s6] sm:$0x7]
    %v610 = vlaneseq
    %v611 = vshrl.u32 %v610, 7
    %v612 = vsub.s32 0, %v611
    %v613 = vrot.slane %v608, %v612
    %v614 = vlaneseq
    %v615 = vshrl.u32 %v614, 7
    %v616 = vsub.s32 1, %v615
    %v617 = vrot.slane %v608, %v616
    %v618 = vlaneseq
    %v619 = vshrl.u32 %v618, 7
    %v620 = vsub.s32 2, %v619
    %v621 = vrot.slane %v608, %v620
    %625 = vmatprep.subr.mxu0 %v561
    %626 = vmatpush1.msra.mxu0 %v560
    %627 = vmatprep.subr.mxu0 %v564
    %628 = vmatpush1.msra.mxu0 %v563
    %629 = vmatprep.subr.mxu0 %v567
    %630 = vmatpush1.msra.mxu0 %v566
    %631 = vmatprep.subr.mxu0 %v570
    %632 = vmatpush1.msra.mxu0 %v569
    %633 = vmatprep.subr.mxu0 %v573
    %634 = vmatpush1.msra.mxu0 %v572
    %635 = vmatprep.subr.mxu0 %v576
    %636 = vmatpush1.msra.mxu0 %v575
    %637 = vmatprep.subr.mxu0 %v579
    %638 = vmatpush1.msra.mxu0 %v578
    %639 = vmatprep.subr.mxu0 %v582
    %640 = vmatpush1.msra.mxu0 %v581
    %641 = vmatprep.subr.mxu0 %v585
    %642 = vmatpush1.msra.mxu0 %v584
    %643 = vmatprep.subr.mxu0 %v588
    %644 = vmatpush1.msra.mxu0 %v587
    %645 = vmatprep.subr.mxu0 %v591
    %646 = vmatpush1.msra.mxu0 %v590
    %647 = vmatprep.subr.mxu0 %v594
    %648 = vmatpush1.msra.mxu0 %v593
    %649 = vmatprep.subr.mxu0 %v597
    %650 = vmatpush1.msra.mxu0 %v596
    %651 = vmatprep.subr.mxu0 %v600
    %652 = vmatpush1.msra.mxu0 %v599
    %653 = vmatprep.subr.mxu0 %v603
    %654 = vmatpush1.msra.mxu0 %v602
    %655 = vmatprep.subr.mxu0 %v606
    %656 = vmatpush1.msra.mxu0 %v605
    %657 = vmatprep.subr.mxu0 0.0
    %658 = vmatpush1.msra.mxu0 0.0
    %659 = vmatprep.subr.mxu0 0.0
    %660 = vmatpush1.msra.mxu0 0.0
    %661 = vmatprep.subr.mxu0 0.0
    %662 = vmatpush1.msra.mxu0 0.0
    %663 = vmatprep.subr.mxu0 0.0
    %664 = vmatpush1.msra.mxu0 0.0
    %665 = vmatprep.subr.mxu0 0.0
    %666 = vmatpush1.msra.mxu0 0.0
    %667 = vmatprep.subr.mxu0 0.0
    %668 = vmatpush1.msra.mxu0 0.0
    %669 = vmatprep.subr.mxu0 0.0
    %670 = vmatpush1.msra.mxu0 0.0
    %671 = vmatprep.subr.mxu0 0.0
    %672 = vmatpush1.msra.mxu0 0.0
    %673 = vmatprep.subr.mxu0 0.0
    %674 = vmatpush1.msra.mxu0 0.0
    %675 = vmatprep.subr.mxu0 0.0
    %676 = vmatpush1.msra.mxu0 0.0
    %677 = vmatprep.subr.mxu0 0.0
    %678 = vmatpush1.msra.mxu0 0.0
    %679 = vmatprep.subr.mxu0 0.0
    %680 = vmatpush1.msra.mxu0 0.0
    %681 = vmatprep.subr.mxu0 0.0
    %682 = vmatpush1.msra.mxu0 0.0
    %683 = vmatprep.subr.mxu0 0.0
    %684 = vmatpush1.msra.mxu0 0.0
    %685 = vmatprep.subr.mxu0 0.0
    %686 = vmatpush1.msra.mxu0 0.0
    %687 = vmatprep.subr.mxu0 0.0
    %688 = vmatpush1.msra.mxu0 0.0
    %689 = vmatprep.mubr.f32.mxu0 0.0
    %690 = vmatmul.mubr.f32.gmra.mrb[0].mxu0 %v556
    %v691 = vpop.f32.mrb[0].mxu0
    %v692 = vadd.f32 %v613, %v691
    %v693 = vpop.f32.mrb[0].mxu0
    %v694 = vadd.f32 %v617, %v693
    %695 = vdwg.mxu0
    %696 = vmatprep.subr.mxu0 0.0
    %697 = vmatpush1.msra.mxu0 %v562
    %698 = vmatprep.subr.mxu0 0.0
    %699 = vmatpush1.msra.mxu0 %v565
    %700 = vmatprep.subr.mxu0 0.0
    %701 = vmatpush1.msra.mxu0 %v568
    %702 = vmatprep.subr.mxu0 0.0
    %703 = vmatpush1.msra.mxu0 %v571
    %704 = vmatprep.subr.mxu0 0.0
    %705 = vmatpush1.msra.mxu0 %v574
    %706 = vmatprep.subr.mxu0 0.0
    %707 = vmatpush1.msra.mxu0 %v577
    %708 = vmatprep.subr.mxu0 0.0
    %709 = vmatpush1.msra.mxu0 %v580
    %710 = vmatprep.subr.mxu0 0.0
    %711 = vmatpush1.msra.mxu0 %v583
    %712 = vmatprep.subr.mxu0 0.0
    %713 = vmatpush1.msra.mxu0 %v586
    %714 = vmatprep.subr.mxu0 0.0
    %715 = vmatpush1.msra.mxu0 %v589
    %716 = vmatprep.subr.mxu0 0.0
    %717 = vmatpush1.msra.mxu0 %v592
    %718 = vmatprep.subr.mxu0 0.0
    %719 = vmatpush1.msra.mxu0 %v595
    %720 = vmatprep.subr.mxu0 0.0
    %721 = vmatpush1.msra.mxu0 %v598
    %722 = vmatprep.subr.mxu0 0.0
    %723 = vmatpush1.msra.mxu0 %v601
    %724 = vmatprep.subr.mxu0 0.0
    %725 = vmatpush1.msra.mxu0 %v604
    %726 = vmatprep.subr.mxu0 0.0
    %727 = vmatpush1.msra.mxu0 %v607
    %728 = vmatprep.subr.mxu0 0.0
    %729 = vmatpush1.msra.mxu0 0.0
    %730 = vmatprep.subr.mxu0 0.0
    %731 = vmatpush1.msra.mxu0 0.0
    %732 = vmatprep.subr.mxu0 0.0
    %733 = vmatpush1.msra.mxu0 0.0
    %734 = vmatprep.subr.mxu0 0.0
    %735 = vmatpush1.msra.mxu0 0.0
    %736 = vmatprep.subr.mxu0 0.0
    %737 = vmatpush1.msra.mxu0 0.0
    %738 = vmatprep.subr.mxu0 0.0
    %739 = vmatpush1.msra.mxu0 0.0
    %740 = vmatprep.subr.mxu0 0.0
    %741 = vmatpush1.msra.mxu0 0.0
    %742 = vmatprep.subr.mxu0 0.0
    %743 = vmatpush1.msra.mxu0 0.0
    %744 = vmatprep.subr.mxu0 0.0
    %745 = vmatpush1.msra.mxu0 0.0
    %746 = vmatprep.subr.mxu0 0.0
    %747 = vmatpush1.msra.mxu0 0.0
    %748 = vmatprep.subr.mxu0 0.0
    %749 = vmatpush1.msra.mxu0 0.0
    %750 = vmatprep.subr.mxu0 0.0
    %751 = vmatpush1.msra.mxu0 0.0
    %752 = vmatprep.subr.mxu0 0.0
    %753 = vmatpush1.msra.mxu0 0.0
    %754 = vmatprep.subr.mxu0 0.0
    %755 = vmatpush1.msra.mxu0 0.0
    %756 = vmatprep.subr.mxu0 0.0
    %757 = vmatpush1.msra.mxu0 0.0
    %758 = vmatprep.subr.mxu0 0.0
    %759 = vmatpush1.msra.mxu0 0.0
    %760 = vmatprep.mubr.f32.mxu0 0.0
    %761 = vmatmul.mubr.f32.gmra.mrb[0].mxu0 %v556
    %v762 = vpop.f32.mrb[0].mxu0
    %v763 = vadd.f32 %v621, %v762
    %v764 = vpop.f32.mrb[0].mxu0
    %765 = vdwg.mxu0
    %v766 = vadd.f32 %v559, %v692
    %v767 = vxor.u32 %v766, 2147483648
    %v768 = vmul.f32 %v767, 1.442695
    %v769 = vpow.pop %v768
    %v770 = vadd.f32 %v769, 1.0
    %v771 = vrcp.pop %v770
    %v772 = vmul.f32 1.0, %v771
    %v774 = vrot.slane %v559, 1
    %v776 = vadd.f32 %v774, %v694
    %v777 = vxor.u32 %v776, 2147483648
    %v778 = vmul.f32 %v777, 1.442695
    %v779 = vpow.pop %v778
    %v780 = vadd.f32 %v779, 1.0
    %v781 = vrcp.pop %v780
    %v782 = vmul.f32 1.0, %v781
    %v783 = vmul.f32 %v772, %v763
    %v784 = vrot.slane %v559, 2
    %v786 = vadd.f32 %v784, %v783
    %v787 = vtanh.pop %v786
    %v788 = vsub.f32 1.0, %v782
    %v789 = vmul.f32 %v788, %v787
    %v790 = vmul.f32 %v782, %v556
    %v791 = vadd.f32 %v789, %v790
    %792 = vst [vmem:[#allocation12 + $0x1] sm:$0x1] %v791
    %s793 = scalar_lea.vmem [#allocation3], 2
    %v794 = vld [vmem:[%s793] ss:$8 sm:$0x7]
    %v795 = vld [vmem:[#allocation11] sm:$0xff]
    %v796 = vld [vmem:[#allocation11 + $0x8] sm:$0xff]
    %v797 = vld [vmem:[#allocation11 + $0x10] sm:$0xff]
    %v798 = vld [vmem:[#allocation11 + $0x18] sm:$0xff]
    %v799 = vld [vmem:[#allocation11 + $0x20] sm:$0xff]
    %v800 = vld [vmem:[#allocation11 + $0x28] sm:$0xff]
    %v801 = vld [vmem:[#allocation11 + $0x30] sm:$0xff]
    %v802 = vld [vmem:[#allocation11 + $0x38] sm:$0xff]
    %v803 = vld [vmem:[#allocation11 + $0x40] sm:$0xff]
    %v804 = vld [vmem:[#allocation11 + $0x48] sm:$0xff]
    %v805 = vld [vmem:[#allocation11 + $0x50] sm:$0xff]
    %v806 = vld [vmem:[#allocation11 + $0x58] sm:$0xff]
    %v807 = vld [vmem:[#allocation11 + $0x60] sm:$0xff]
    %v808 = vld [vmem:[#allocation11 + $0x68] sm:$0xff]
    %v809 = vld [vmem:[#allocation11 + $0x70] sm:$0xff]
    %v810 = vld [vmem:[#allocation11 + $0x78] sm:$0xff]
    %v811 = vld [vmem:[#allocation11 + $0x80] sm:$0xff]
    %v812 = vld [vmem:[#allocation11 + $0x88] sm:$0xff]
    %v813 = vld [vmem:[#allocation11 + $0x90] sm:$0xff]
    %v814 = vld [vmem:[#allocation11 + $0x98] sm:$0xff]
    %v815 = vld [vmem:[#allocation11 + $0xa0] sm:$0xff]
    %v816 = vld [vmem:[#allocation11 + $0xa8] sm:$0xff]
    %v817 = vld [vmem:[#allocation11 + $0xb0] sm:$0xff]
    %v818 = vld [vmem:[#allocation11 + $0xb8] sm:$0xff]
    %v819 = vld [vmem:[#allocation11 + $0xc0] sm:$0xff]
    %v820 = vld [vmem:[#allocation11 + $0xc8] sm:$0xff]
    %v821 = vld [vmem:[#allocation11 + $0xd0] sm:$0xff]
    %v822 = vld [vmem:[#allocation11 + $0xd8] sm:$0xff]
    %v823 = vld [vmem:[#allocation11 + $0xe0] sm:$0xff]
    %v824 = vld [vmem:[#allocation11 + $0xe8] sm:$0xff]
    %v825 = vld [vmem:[#allocation11 + $0xf0] sm:$0xff]
    %v826 = vld [vmem:[#allocation11 + $0xf8] sm:$0xff]
    %v827 = vld [vmem:[#allocation11 + $0x100] sm:$0xff]
    %v828 = vld [vmem:[#allocation11 + $0x108] sm:$0xff]
    %v829 = vld [vmem:[#allocation11 + $0x110] sm:$0xff]
    %v830 = vld [vmem:[#allocation11 + $0x118] sm:$0xff]
    %v831 = vld [vmem:[#allocation11 + $0x120] sm:$0xff]
    %v832 = vld [vmem:[#allocation11 + $0x128] sm:$0xff]
    %v833 = vld [vmem:[#allocation11 + $0x130] sm:$0xff]
    %v834 = vld [vmem:[#allocation11 + $0x138] sm:$0xff]
    %v835 = vld [vmem:[#allocation11 + $0x140] sm:$0xff]
    %v836 = vld [vmem:[#allocation11 + $0x148] sm:$0xff]
    %v837 = vld [vmem:[#allocation11 + $0x150] sm:$0xff]
    %v838 = vld [vmem:[#allocation11 + $0x158] sm:$0xff]
    %v839 = vld [vmem:[#allocation11 + $0x160] sm:$0xff]
    %v840 = vld [vmem:[#allocation11 + $0x168] sm:$0xff]
    %v841 = vld [vmem:[#allocation11 + $0x170] sm:$0xff]
    %v842 = vld [vmem:[#allocation11 + $0x178] sm:$0xff]
    %v843 = vld [vmem:[%s6] sm:$0x7]
    %v845 = vlaneseq
    %v846 = vshrl.u32 %v845, 7
    %v847 = vsub.s32 0, %v846
    %v848 = vrot.slane %v843, %v847
    %v849 = vlaneseq
    %v850 = vshrl.u32 %v849, 7
    %v851 = vsub.s32 1, %v850
    %v852 = vrot.slane %v843, %v851
    %v853 = vlaneseq
    %v854 = vshrl.u32 %v853, 7
    %v855 = vsub.s32 2, %v854
    %v856 = vrot.slane %v843, %v855
    %860 = vmatprep.subr.mxu0 %v796
    %861 = vmatpush1.msra.mxu0 %v795
    %862 = vmatprep.subr.mxu0 %v799
    %863 = vmatpush1.msra.mxu0 %v798
    %864 = vmatprep.subr.mxu0 %v802
    %865 = vmatpush1.msra.mxu0 %v801
    %866 = vmatprep.subr.mxu0 %v805
    %867 = vmatpush1.msra.mxu0 %v804
    %868 = vmatprep.subr.mxu0 %v808
    %869 = vmatpush1.msra.mxu0 %v807
    %870 = vmatprep.subr.mxu0 %v811
    %871 = vmatpush1.msra.mxu0 %v810
    %872 = vmatprep.subr.mxu0 %v814
    %873 = vmatpush1.msra.mxu0 %v813
    %874 = vmatprep.subr.mxu0 %v817
    %875 = vmatpush1.msra.mxu0 %v816
    %876 = vmatprep.subr.mxu0 %v820
    %877 = vmatpush1.msra.mxu0 %v819
    %878 = vmatprep.subr.mxu0 %v823
    %879 = vmatpush1.msra.mxu0 %v822
    %880 = vmatprep.subr.mxu0 %v826
    %881 = vmatpush1.msra.mxu0 %v825
    %882 = vmatprep.subr.mxu0 %v829
    %883 = vmatpush1.msra.mxu0 %v828
    %884 = vmatprep.subr.mxu0 %v832
    %885 = vmatpush1.msra.mxu0 %v831
    %886 = vmatprep.subr.mxu0 %v835
    %887 = vmatpush1.msra.mxu0 %v834
    %888 = vmatprep.subr.mxu0 %v838
    %889 = vmatpush1.msra.mxu0 %v837
    %890 = vmatprep.subr.mxu0 %v841
    %891 = vmatpush1.msra.mxu0 %v840
    %892 = vmatprep.subr.mxu0 0.0
    %893 = vmatpush1.msra.mxu0 0.0
    %894 = vmatprep.subr.mxu0 0.0
    %895 = vmatpush1.msra.mxu0 0.0
    %896 = vmatprep.subr.mxu0 0.0
    %897 = vmatpush1.msra.mxu0 0.0
    %898 = vmatprep.subr.mxu0 0.0
    %899 = vmatpush1.msra.mxu0 0.0
    %900 = vmatprep.subr.mxu0 0.0
    %901 = vmatpush1.msra.mxu0 0.0
    %902 = vmatprep.subr.mxu0 0.0
    %903 = vmatpush1.msra.mxu0 0.0
    %904 = vmatprep.subr.mxu0 0.0
    %905 = vmatpush1.msra.mxu0 0.0
    %906 = vmatprep.subr.mxu0 0.0
    %907 = vmatpush1.msra.mxu0 0.0
    %908 = vmatprep.subr.mxu0 0.0
    %909 = vmatpush1.msra.mxu0 0.0
    %910 = vmatprep.subr.mxu0 0.0
    %911 = vmatpush1.msra.mxu0 0.0
    %912 = vmatprep.subr.mxu0 0.0
    %913 = vmatpush1.msra.mxu0 0.0
    %914 = vmatprep.subr.mxu0 0.0
    %915 = vmatpush1.msra.mxu0 0.0
    %916 = vmatprep.subr.mxu0 0.0
    %917 = vmatpush1.msra.mxu0 0.0
    %918 = vmatprep.subr.mxu0 0.0
    %919 = vmatpush1.msra.mxu0 0.0
    %920 = vmatprep.subr.mxu0 0.0
    %921 = vmatpush1.msra.mxu0 0.0
    %922 = vmatprep.subr.mxu0 0.0
    %923 = vmatpush1.msra.mxu0 0.0
    %924 = vmatprep.mubr.f32.mxu0 0.0
    %925 = vmatmul.mubr.f32.gmra.mrb[0].mxu0 %v791
    %v926 = vpop.f32.mrb[0].mxu0
    %v927 = vadd.f32 %v848, %v926
    %v928 = vpop.f32.mrb[0].mxu0
    %v929 = vadd.f32 %v852, %v928
    %930 = vdwg.mxu0
    %931 = vmatprep.subr.mxu0 0.0
    %932 = vmatpush1.msra.mxu0 %v797
    %933 = vmatprep.subr.mxu0 0.0
    %934 = vmatpush1.msra.mxu0 %v800
    %935 = vmatprep.subr.mxu0 0.0
    %936 = vmatpush1.msra.mxu0 %v803
    %937 = vmatprep.subr.mxu0 0.0
    %938 = vmatpush1.msra.mxu0 %v806
    %939 = vmatprep.subr.mxu0 0.0
    %940 = vmatpush1.msra.mxu0 %v809
    %941 = vmatprep.subr.mxu0 0.0
    %942 = vmatpush1.msra.mxu0 %v812
    %943 = vmatprep.subr.mxu0 0.0
    %944 = vmatpush1.msra.mxu0 %v815
    %945 = vmatprep.subr.mxu0 0.0
    %946 = vmatpush1.msra.mxu0 %v818
    %947 = vmatprep.subr.mxu0 0.0
    %948 = vmatpush1.msra.mxu0 %v821
    %949 = vmatprep.subr.mxu0 0.0
    %950 = vmatpush1.msra.mxu0 %v824
    %951 = vmatprep.subr.mxu0 0.0
    %952 = vmatpush1.msra.mxu0 %v827
    %953 = vmatprep.subr.mxu0 0.0
    %954 = vmatpush1.msra.mxu0 %v830
    %955 = vmatprep.subr.mxu0 0.0
    %956 = vmatpush1.msra.mxu0 %v833
    %957 = vmatprep.subr.mxu0 0.0
    %958 = vmatpush1.msra.mxu0 %v836
    %959 = vmatprep.subr.mxu0 0.0
    %960 = vmatpush1.msra.mxu0 %v839
    %961 = vmatprep.subr.mxu0 0.0
    %962 = vmatpush1.msra.mxu0 %v842
    %963 = vmatprep.subr.mxu0 0.0
    %964 = vmatpush1.msra.mxu0 0.0
    %965 = vmatprep.subr.mxu0 0.0
    %966 = vmatpush1.msra.mxu0 0.0
    %967 = vmatprep.subr.mxu0 0.0
    %968 = vmatpush1.msra.mxu0 0.0
    %969 = vmatprep.subr.mxu0 0.0
    %970 = vmatpush1.msra.mxu0 0.0
    %971 = vmatprep.subr.mxu0 0.0
    %972 = vmatpush1.msra.mxu0 0.0
    %973 = vmatprep.subr.mxu0 0.0
    %974 = vmatpush1.msra.mxu0 0.0
    %975 = vmatprep.subr.mxu0 0.0
    %976 = vmatpush1.msra.mxu0 0.0
    %977 = vmatprep.subr.mxu0 0.0
    %978 = vmatpush1.msra.mxu0 0.0
    %979 = vmatprep.subr.mxu0 0.0
    %980 = vmatpush1.msra.mxu0 0.0
    %981 = vmatprep.subr.mxu0 0.0
    %982 = vmatpush1.msra.mxu0 0.0
    %983 = vmatprep.subr.mxu0 0.0
    %984 = vmatpush1.msra.mxu0 0.0
    %985 = vmatprep.subr.mxu0 0.0
    %986 = vmatpush1.msra.mxu0 0.0
    %987 = vmatprep.subr.mxu0 0.0
    %988 = vmatpush1.msra.mxu0 0.0
    %989 = vmatprep.subr.mxu0 0.0
    %990 = vmatpush1.msra.mxu0 0.0
    %991 = vmatprep.subr.mxu0 0.0
    %992 = vmatpush1.msra.mxu0 0.0
    %993 = vmatprep.subr.mxu0 0.0
    %994 = vmatpush1.msra.mxu0 0.0
    %995 = vmatprep.mubr.f32.mxu0 0.0
    %996 = vmatmul.mubr.f32.gmra.mrb[0].mxu0 %v791
    %v997 = vpop.f32.mrb[0].mxu0
    %v998 = vadd.f32 %v856, %v997
    %v999 = vpop.f32.mrb[0].mxu0
    %1000 = vdwg.mxu0
    %v1001 = vadd.f32 %v794, %v927
    %v1002 = vxor.u32 %v1001, 2147483648
    %v1003 = vmul.f32 %v1002, 1.442695
    %v1004 = vpow.pop %v1003
    %v1005 = vadd.f32 %v1004, 1.0
    %v1006 = vrcp.pop %v1005
    %v1007 = vmul.f32 1.0, %v1006
    %v1009 = vrot.slane %v794, 1
    %v1011 = vadd.f32 %v1009, %v929
    %v1012 = vxor.u32 %v1011, 2147483648
    %v1013 = vmul.f32 %v1012, 1.442695
    %v1014 = vpow.pop %v1013
    %v1015 = vadd.f32 %v1014, 1.0
    %v1016 = vrcp.pop %v1015
    %v1017 = vmul.f32 1.0, %v1016
    %v1018 = vmul.f32 %v1007, %v998
    %v1019 = vrot.slane %v794, 2
    %v1021 = vadd.f32 %v1019, %v1018
    %v1022 = vtanh.pop %v1021
    %v1023 = vsub.f32 1.0, %v1017
    %v1024 = vmul.f32 %v1023, %v1022
    %v1025 = vmul.f32 %v1017, %v791
    %v1026 = vadd.f32 %v1024, %v1025
    %1027 = vst [vmem:[#allocation12 + $0x2] sm:$0x1] %v1026
    %s1028 = scalar_lea.vmem [#allocation3], 3
    %v1029 = vld [vmem:[%s1028] ss:$8 sm:$0x7]
    %v1030 = vld [vmem:[#allocation11] sm:$0xff]
    %v1031 = vld [vmem:[#allocation11 + $0x8] sm:$0xff]
    %v1032 = vld [vmem:[#allocation11 + $0x10] sm:$0xff]
    %v1033 = vld [vmem:[#allocation11 + $0x18] sm:$0xff]
    %v1034 = vld [vmem:[#allocation11 + $0x20] sm:$0xff]
    %v1035 = vld [vmem:[#allocation11 + $0x28] sm:$0xff]
    %v1036 = vld [vmem:[#allocation11 + $0x30] sm:$0xff]
    %v1037 = vld [vmem:[#allocation11 + $0x38] sm:$0xff]
    %v1038 = vld [vmem:[#allocation11 + $0x40] sm:$0xff]
    %v1039 = vld [vmem:[#allocation11 + $0x48] sm:$0xff]
    %v1040 = vld [vmem:[#allocation11 + $0x50] sm:$0xff]
    %v1041 = vld [vmem:[#allocation11 + $0x58] sm:$0xff]
    %v1042 = vld [vmem:[#allocation11 + $0x60] sm:$0xff]
    %v1043 = vld [vmem:[#allocation11 + $0x68] sm:$0xff]
    %v1044 = vld [vmem:[#allocation11 + $0x70] sm:$0xff]
    %v1045 = vld [vmem:[#allocation11 + $0x78] sm:$0xff]
    %v1046 = vld [vmem:[#allocation11 + $0x80] sm:$0xff]
    %v1047 = vld [vmem:[#allocation11 + $0x88] sm:$0xff]
    %v1048 = vld [vmem:[#allocation11 + $0x90] sm:$0xff]
    %v1049 = vld [vmem:[#allocation11 + $0x98] sm:$0xff]
    %v1050 = vld [vmem:[#allocation11 + $0xa0] sm:$0xff]
    %v1051 = vld [vmem:[#allocation11 + $0xa8] sm:$0xff]
    %v1052 = vld [vmem:[#allocation11 + $0xb0] sm:$0xff]
    %v1053 = vld [vmem:[#allocation11 + $0xb8] sm:$0xff]
    %v1054 = vld [vmem:[#allocation11 + $0xc0] sm:$0xff]
    %v1055 = vld [vmem:[#allocation11 + $0xc8] sm:$0xff]
    %v1056 = vld [vmem:[#allocation11 + $0xd0] sm:$0xff]
    %v1057 = vld [vmem:[#allocation11 + $0xd8] sm:$0xff]
    %v1058 = vld [vmem:[#allocation11 + $0xe0] sm:$0xff]
    %v1059 = vld [vmem:[#allocation11 + $0xe8] sm:$0xff]
    %v1060 = vld [vmem:[#allocation11 + $0xf0] sm:$0xff]
    %v1061 = vld [vmem:[#allocation11 + $0xf8] sm:$0xff]
    %v1062 = vld [vmem:[#allocation11 + $0x100] sm:$0xff]
    %v1063 = vld [vmem:[#allocation11 + $0x108] sm:$0xff]
    %v1064 = vld [vmem:[#allocation11 + $0x110] sm:$0xff]
    %v1065 = vld [vmem:[#allocation11 + $0x118] sm:$0xff]
    %v1066 = vld [vmem:[#allocation11 + $0x120] sm:$0xff]
    %v1067 = vld [vmem:[#allocation11 + $0x128] sm:$0xff]
    %v1068 = vld [vmem:[#allocation11 + $0x130] sm:$0xff]
    %v1069 = vld [vmem:[#allocation11 + $0x138] sm:$0xff]
    %v1070 = vld [vmem:[#allocation11 + $0x140] sm:$0xff]
    %v1071 = vld [vmem:[#allocation11 + $0x148] sm:$0xff]
    %v1072 = vld [vmem:[#allocation11 + $0x150] sm:$0xff]
    %v1073 = vld [vmem:[#allocation11 + $0x158] sm:$0xff]
    %v1074 = vld [vmem:[#allocation11 + $0x160] sm:$0xff]
    %v1075 = vld [vmem:[#allocation11 + $0x168] sm:$0xff]
    %v1076 = vld [vmem:[#allocation11 + $0x170] sm:$0xff]
    %v1077 = vld [vmem:[#allocation11 + $0x178] sm:$0xff]
    %v1078 = vld [vmem:[%s6] sm:$0x7]
    %v1080 = vlaneseq
    %v1081 = vshrl.u32 %v1080, 7
    %v1082 = vsub.s32 0, %v1081
    %v1083 = vrot.slane %v1078, %v1082
    %v1084 = vlaneseq
    %v1085 = vshrl.u32 %v1084, 7
    %v1086 = vsub.s32 1, %v1085
    %v1087 = vrot.slane %v1078, %v1086
    %v1088 = vlaneseq
    %v1089 = vshrl.u32 %v1088, 7
    %v1090 = vsub.s32 2, %v1089
    %v1091 = vrot.slane %v1078, %v1090
    %1095 = vmatprep.subr.mxu0 %v1031
    %1096 = vmatpush1.msra.mxu0 %v1030
    %1097 = vmatprep.subr.mxu0 %v1034
    %1098 = vmatpush1.msra.mxu0 %v1033
    %1099 = vmatprep.subr.mxu0 %v1037
    %1100 = vmatpush1.msra.mxu0 %v1036
    %1101 = vmatprep.subr.mxu0 %v1040
    %1102 = vmatpush1.msra.mxu0 %v1039
    %1103 = vmatprep.subr.mxu0 %v1043
    %1104 = vmatpush1.msra.mxu0 %v1042
    %1105 = vmatprep.subr.mxu0 %v1046
    %1106 = vmatpush1.msra.mxu0 %v1045
    %1107 = vmatprep.subr.mxu0 %v1049
    %1108 = vmatpush1.msra.mxu0 %v1048
    %1109 = vmatprep.subr.mxu0 %v1052
    %1110 = vmatpush1.msra.mxu0 %v1051
    %1111 = vmatprep.subr.mxu0 %v1055
    %1112 = vmatpush1.msra.mxu0 %v1054
    %1113 = vmatprep.subr.mxu0 %v1058
    %1114 = vmatpush1.msra.mxu0 %v1057
    %1115 = vmatprep.subr.mxu0 %v1061
    %1116 = vmatpush1.msra.mxu0 %v1060
    %1117 = vmatprep.subr.mxu0 %v1064
    %1118 = vmatpush1.msra.mxu0 %v1063
    %1119 = vmatprep.subr.mxu0 %v1067
    %1120 = vmatpush1.msra.mxu0 %v1066
    %1121 = vmatprep.subr.mxu0 %v1070
    %1122 = vmatpush1.msra.mxu0 %v1069
    %1123 = vmatprep.subr.mxu0 %v1073
    %1124 = vmatpush1.msra.mxu0 %v1072
    %1125 = vmatprep.subr.mxu0 %v1076
    %1126 = vmatpush1.msra.mxu0 %v1075
    %1127 = vmatprep.subr.mxu0 0.0
    %1128 = vmatpush1.msra.mxu0 0.0
    %1129 = vmatprep.subr.mxu0 0.0
    %1130 = vmatpush1.msra.mxu0 0.0
    %1131 = vmatprep.subr.mxu0 0.0
    %1132 = vmatpush1.msra.mxu0 0.0
    %1133 = vmatprep.subr.mxu0 0.0
    %1134 = vmatpush1.msra.mxu0 0.0
    %1135 = vmatprep.subr.mxu0 0.0
    %1136 = vmatpush1.msra.mxu0 0.0
    %1137 = vmatprep.subr.mxu0 0.0
    %1138 = vmatpush1.msra.mxu0 0.0
    %1139 = vmatprep.subr.mxu0 0.0
    %1140 = vmatpush1.msra.mxu0 0.0
    %1141 = vmatprep.subr.mxu0 0.0
    %1142 = vmatpush1.msra.mxu0 0.0
    %1143 = vmatprep.subr.mxu0 0.0
    %1144 = vmatpush1.msra.mxu0 0.0
    %1145 = vmatprep.subr.mxu0 0.0
    %1146 = vmatpush1.msra.mxu0 0.0
    %1147 = vmatprep.subr.mxu0 0.0
    %1148 = vmatpush1.msra.mxu0 0.0
    %1149 = vmatprep.subr.mxu0 0.0
    %1150 = vmatpush1.msra.mxu0 0.0
    %1151 = vmatprep.subr.mxu0 0.0
    %1152 = vmatpush1.msra.mxu0 0.0
    %1153 = vmatprep.subr.mxu0 0.0
    %1154 = vmatpush1.msra.mxu0 0.0
    %1155 = vmatprep.subr.mxu0 0.0
    %1156 = vmatpush1.msra.mxu0 0.0
    %1157 = vmatprep.subr.mxu0 0.0
    %1158 = vmatpush1.msra.mxu0 0.0
    %1159 = vmatprep.mubr.f32.mxu0 0.0
    %1160 = vmatmul.mubr.f32.gmra.mrb[0].mxu0 %v1026
    %v1161 = vpop.f32.mrb[0].mxu0
    %v1162 = vadd.f32 %v1083, %v1161
    %v1163 = vpop.f32.mrb[0].mxu0
    %v1164 = vadd.f32 %v1087, %v1163
    %1165 = vdwg.mxu0
    %1166 = vmatprep.subr.mxu0 0.0
    %1167 = vmatpush1.msra.mxu0 %v1032
    %1168 = vmatprep.subr.mxu0 0.0
    %1169 = vmatpush1.msra.mxu0 %v1035
    %1170 = vmatprep.subr.mxu0 0.0
    %1171 = vmatpush1.msra.mxu0 %v1038
    %1172 = vmatprep.subr.mxu0 0.0
    %1173 = vmatpush1.msra.mxu0 %v1041
    %1174 = vmatprep.subr.mxu0 0.0
    %1175 = vmatpush1.msra.mxu0 %v1044
    %1176 = vmatprep.subr.mxu0 0.0
    %1177 = vmatpush1.msra.mxu0 %v1047
    %1178 = vmatprep.subr.mxu0 0.0
    %1179 = vmatpush1.msra.mxu0 %v1050
    %1180 = vmatprep.subr.mxu0 0.0
    %1181 = vmatpush1.msra.mxu0 %v1053
    %1182 = vmatprep.subr.mxu0 0.0
    %1183 = vmatpush1.msra.mxu0 %v1056
    %1184 = vmatprep.subr.mxu0 0.0
    %1185 = vmatpush1.msra.mxu0 %v1059
    %1186 = vmatprep.subr.mxu0 0.0
    %1187 = vmatpush1.msra.mxu0 %v1062
    %1188 = vmatprep.subr.mxu0 0.0
    %1189 = vmatpush1.msra.mxu0 %v1065
    %1190 = vmatprep.subr.mxu0 0.0
    %1191 = vmatpush1.msra.mxu0 %v1068
    %1192 = vmatprep.subr.mxu0 0.0
    %1193 = vmatpush1.msra.mxu0 %v1071
    %1194 = vmatprep.subr.mxu0 0.0
    %1195 = vmatpush1.msra.mxu0 %v1074
    %1196 = vmatprep.subr.mxu0 0.0
    %1197 = vmatpush1.msra.mxu0 %v1077
    %1198 = vmatprep.subr.mxu0 0.0
    %1199 = vmatpush1.msra.mxu0 0.0
    %1200 = vmatprep.subr.mxu0 0.0
    %1201 = vmatpush1.msra.mxu0 0.0
    %1202 = vmatprep.subr.mxu0 0.0
    %1203 = vmatpush1.msra.mxu0 0.0
    %1204 = vmatprep.subr.mxu0 0.0
    %1205 = vmatpush1.msra.mxu0 0.0
    %1206 = vmatprep.subr.mxu0 0.0
    %1207 = vmatpush1.msra.mxu0 0.0
    %1208 = vmatprep.subr.mxu0 0.0
    %1209 = vmatpush1.msra.mxu0 0.0
    %1210 = vmatprep.subr.mxu0 0.0
    %1211 = vmatpush1.msra.mxu0 0.0
    %1212 = vmatprep.subr.mxu0 0.0
    %1213 = vmatpush1.msra.mxu0 0.0
    %1214 = vmatprep.subr.mxu0 0.0
    %1215 = vmatpush1.msra.mxu0 0.0
    %1216 = vmatprep.subr.mxu0 0.0
    %1217 = vmatpush1.msra.mxu0 0.0
    %1218 = vmatprep.subr.mxu0 0.0
    %1219 = vmatpush1.msra.mxu0 0.0
    %1220 = vmatprep.subr.mxu0 0.0
    %1221 = vmatpush1.msra.mxu0 0.0
    %1222 = vmatprep.subr.mxu0 0.0
    %1223 = vmatpush1.msra.mxu0 0.0
    %1224 = vmatprep.subr.mxu0 0.0
    %1225 = vmatpush1.msra.mxu0 0.0
    %1226 = vmatprep.subr.mxu0 0.0
    %1227 = vmatpush1.msra.mxu0 0.0
    %1228 = vmatprep.subr.mxu0 0.0
    %1229 = vmatpush1.msra.mxu0 0.0
    %1230 = vmatprep.mubr.f32.mxu0 0.0
    %1231 = vmatmul.mubr.f32.gmra.mrb[0].mxu0 %v1026
    %v1232 = vpop.f32.mrb[0].mxu0
    %v1233 = vadd.f32 %v1091, %v1232
    %v1234 = vpop.f32.mrb[0].mxu0
    %1235 = vdwg.mxu0
    %v1236 = vadd.f32 %v1029, %v1162
    %v1237 = vxor.u32 %v1236, 2147483648
    %v1238 = vmul.f32 %v1237, 1.442695
    %v1239 = vpow.pop %v1238
    %v1240 = vadd.f32 %v1239, 1.0
    %v1241 = vrcp.pop %v1240
    %v1242 = vmul.f32 1.0, %v1241
    %v1244 = vrot.slane %v1029, 1
    %v1246 = vadd.f32 %v1244, %v1164
    %v1247 = vxor.u32 %v1246, 2147483648
    %v1248 = vmul.f32 %v1247, 1.442695
    %v1249 = vpow.pop %v1248
    %v1250 = vadd.f32 %v1249, 1.0
    %v1251 = vrcp.pop %v1250
    %v1252 = vmul.f32 1.0, %v1251
    %v1253 = vmul.f32 %v1242, %v1233
    %v1254 = vrot.slane %v1029, 2
    %v1256 = vadd.f32 %v1254, %v1253
    %v1257 = vtanh.pop %v1256
    %v1258 = vsub.f32 1.0, %v1252
    %v1259 = vmul.f32 %v1258, %v1257
    %v1260 = vmul.f32 %v1252, %v1026
    %v1261 = vadd.f32 %v1259, %v1260
    %1262 = vst [vmem:[#allocation12 + $0x3] sm:$0x1] %v1261
    %s1263 = scalar_lea.vmem [#allocation3], 4
    %v1264 = vld [vmem:[%s1263] ss:$8 sm:$0x7]
    %v1265 = vld [vmem:[#allocation11] sm:$0xff]
    %v1266 = vld [vmem:[#allocation11 + $0x8] sm:$0xff]
    %v1267 = vld [vmem:[#allocation11 + $0x10] sm:$0xff]
    %v1268 = vld [vmem:[#allocation11 + $0x18] sm:$0xff]
    %v1269 = vld [vmem:[#allocation11 + $0x20] sm:$0xff]
    %v1270 = vld [vmem:[#allocation11 + $0x28] sm:$0xff]
    %v1271 = vld [vmem:[#allocation11 + $0x30] sm:$0xff]
    %v1272 = vld [vmem:[#allocation11 + $0x38] sm:$0xff]
    %v1273 = vld [vmem:[#allocation11 + $0x40] sm:$0xff]
    %v1274 = vld [vmem:[#allocation11 + $0x48] sm:$0xff]
    %v1275 = vld [vmem:[#allocation11 + $0x50] sm:$0xff]
    %v1276 = vld [vmem:[#allocation11 + $0x58] sm:$0xff]
    %v1277 = vld [vmem:[#allocation11 + $0x60] sm:$0xff]
    %v1278 = vld [vmem:[#allocation11 + $0x68] sm:$0xff]
    %v1279 = vld [vmem:[#allocation11 + $0x70] sm:$0xff]
    %v1280 = vld [vmem:[#allocation11 + $0x78] sm:$0xff]
    %v1281 = vld [vmem:[#allocation11 + $0x80] sm:$0xff]
    %v1282 = vld [vmem:[#allocation11 + $0x88] sm:$0xff]
    %v1283 = vld [vmem:[#allocation11 + $0x90] sm:$0xff]
    %v1284 = vld [vmem:[#allocation11 + $0x98] sm:$0xff]
    %v1285 = vld [vmem:[#allocation11 + $0xa0] sm:$0xff]
    %v1286 = vld [vmem:[#allocation11 + $0xa8] sm:$0xff]
    %v1287 = vld [vmem:[#allocation11 + $0xb0] sm:$0xff]
    %v1288 = vld [vmem:[#allocation11 + $0xb8] sm:$0xff]
    %v1289 = vld [vmem:[#allocation11 + $0xc0] sm:$0xff]
    %v1290 = vld [vmem:[#allocation11 + $0xc8] sm:$0xff]
    %v1291 = vld [vmem:[#allocation11 + $0xd0] sm:$0xff]
    %v1292 = vld [vmem:[#allocation11 + $0xd8] sm:$0xff]
    %v1293 = vld [vmem:[#allocation11 + $0xe0] sm:$0xff]
    %v1294 = vld [vmem:[#allocation11 + $0xe8] sm:$0xff]
    %v1295 = vld [vmem:[#allocation11 + $0xf0] sm:$0xff]
    %v1296 = vld [vmem:[#allocation11 + $0xf8] sm:$0xff]
    %v1297 = vld [vmem:[#allocation11 + $0x100] sm:$0xff]
    %v1298 = vld [vmem:[#allocation11 + $0x108] sm:$0xff]
    %v1299 = vld [vmem:[#allocation11 + $0x110] sm:$0xff]
    %v1300 = vld [vmem:[#allocation11 + $0x118] sm:$0xff]
    %v1301 = vld [vmem:[#allocation11 + $0x120] sm:$0xff]
    %v1302 = vld [vmem:[#allocation11 + $0x128] sm:$0xff]
    %v1303 = vld [vmem:[#allocation11 + $0x130] sm:$0xff]
    %v1304 = vld [vmem:[#allocation11 + $0x138] sm:$0xff]
    %v1305 = vld [vmem:[#allocation11 + $0x140] sm:$0xff]
    %v1306 = vld [vmem:[#allocation11 + $0x148] sm:$0xff]
    %v1307 = vld [vmem:[#allocation11 + $0x150] sm:$0xff]
    %v1308 = vld [vmem:[#allocation11 + $0x158] sm:$0xff]
    %v1309 = vld [vmem:[#allocation11 + $0x160] sm:$0xff]
    %v1310 = vld [vmem:[#allocation11 + $0x168] sm:$0xff]
    %v1311 = vld [vmem:[#allocation11 + $0x170] sm:$0xff]
    %v1312 = vld [vmem:[#allocation11 + $0x178] sm:$0xff]
    %v1313 = vld [vmem:[%s6] sm:$0x7]
    %v1315 = vlaneseq
    %v1316 = vshrl.u32 %v1315, 7
    %v1317 = vsub.s32 0, %v1316
    %v1318 = vrot.slane %v1313, %v1317
    %v1319 = vlaneseq
    %v1320 = vshrl.u32 %v1319, 7
    %v1321 = vsub.s32 1, %v1320
    %v1322 = vrot.slane %v1313, %v1321
    %v1323 = vlaneseq
    %v1324 = vshrl.u32 %v1323, 7
    %v1325 = vsub.s32 2, %v1324
    %v1326 = vrot.slane %v1313, %v1325
    %1330 = vmatprep.subr.mxu0 %v1266
    %1331 = vmatpush1.msra.mxu0 %v1265
    %1332 = vmatprep.subr.mxu0 %v1269
    %1333 = vmatpush1.msra.mxu0 %v1268
    %1334 = vmatprep.subr.mxu0 %v1272
    %1335 = vmatpush1.msra.mxu0 %v1271
    %1336 = vmatprep.subr.mxu0 %v1275
    %1337 = vmatpush1.msra.mxu0 %v1274
    %1338 = vmatprep.subr.mxu0 %v1278
    %1339 = vmatpush1.msra.mxu0 %v1277
    %1340 = vmatprep.subr.mxu0 %v1281
    %1341 = vmatpush1.msra.mxu0 %v1280
    %1342 = vmatprep.subr.mxu0 %v1284
    %1343 = vmatpush1.msra.mxu0 %v1283
    %1344 = vmatprep.subr.mxu0 %v1287
    %1345 = vmatpush1.msra.mxu0 %v1286
    %1346 = vmatprep.subr.mxu0 %v1290
    %1347 = vmatpush1.msra.mxu0 %v1289
    %1348 = vmatprep.subr.mxu0 %v1293
    %1349 = vmatpush1.msra.mxu0 %v1292
    %1350 = vmatprep.subr.mxu0 %v1296
    %1351 = vmatpush1.msra.mxu0 %v1295
    %1352 = vmatprep.subr.mxu0 %v1299
    %1353 = vmatpush1.msra.mxu0 %v1298
    %1354 = vmatprep.subr.mxu0 %v1302
    %1355 = vmatpush1.msra.mxu0 %v1301
    %1356 = vmatprep.subr.mxu0 %v1305
    %1357 = vmatpush1.msra.mxu0 %v1304
    %1358 = vmatprep.subr.mxu0 %v1308
    %1359 = vmatpush1.msra.mxu0 %v1307
    %1360 = vmatprep.subr.mxu0 %v1311
    %1361 = vmatpush1.msra.mxu0 %v1310
    %1362 = vmatprep.subr.mxu0 0.0
    %1363 = vmatpush1.msra.mxu0 0.0
    %1364 = vmatprep.subr.mxu0 0.0
    %1365 = vmatpush1.msra.mxu0 0.0
    %1366 = vmatprep.subr.mxu0 0.0
    %1367 = vmatpush1.msra.mxu0 0.0
    %1368 = vmatprep.subr.mxu0 0.0
    %1369 = vmatpush1.msra.mxu0 0.0
    %1370 = vmatprep.subr.mxu0 0.0
    %1371 = vmatpush1.msra.mxu0 0.0
    %1372 = vmatprep.subr.mxu0 0.0
    %1373 = vmatpush1.msra.mxu0 0.0
    %1374 = vmatprep.subr.mxu0 0.0
    %1375 = vmatpush1.msra.mxu0 0.0
    %1376 = vmatprep.subr.mxu0 0.0
    %1377 = vmatpush1.msra.mxu0 0.0
    %1378 = vmatprep.subr.mxu0 0.0
    %1379 = vmatpush1.msra.mxu0 0.0
    %1380 = vmatprep.subr.mxu0 0.0
    %1381 = vmatpush1.msra.mxu0 0.0
    %1382 = vmatprep.subr.mxu0 0.0
    %1383 = vmatpush1.msra.mxu0 0.0
    %1384 = vmatprep.subr.mxu0 0.0
    %1385 = vmatpush1.msra.mxu0 0.0
    %1386 = vmatprep.subr.mxu0 0.0
    %1387 = vmatpush1.msra.mxu0 0.0
    %1388 = vmatprep.subr.mxu0 0.0
    %1389 = vmatpush1.msra.mxu0 0.0
    %1390 = vmatprep.subr.mxu0 0.0
    %1391 = vmatpush1.msra.mxu0 0.0
    %1392 = vmatprep.subr.mxu0 0.0
    %1393 = vmatpush1.msra.mxu0 0.0
    %1394 = vmatprep.mubr.f32.mxu0 0.0
    %1395 = vmatmul.mubr.f32.gmra.mrb[0].mxu0 %v1261
    %v1396 = vpop.f32.mrb[0].mxu0
    %v1397 = vadd.f32 %v1318, %v1396
    %v1398 = vpop.f32.mrb[0].mxu0
    %v1399 = vadd.f32 %v1322, %v1398
    %1400 = vdwg.mxu0
    %1401 = vmatprep.subr.mxu0 0.0
    %1402 = vmatpush1.msra.mxu0 %v1267
    %1403 = vmatprep.subr.mxu0 0.0
    %1404 = vmatpush1.msra.mxu0 %v1270
    %1405 = vmatprep.subr.mxu0 0.0
    %1406 = vmatpush1.msra.mxu0 %v1273
    %1407 = vmatprep.subr.mxu0 0.0
    %1408 = vmatpush1.msra.mxu0 %v1276
    %1409 = vmatprep.subr.mxu0 0.0
    %1410 = vmatpush1.msra.mxu0 %v1279
    %1411 = vmatprep.subr.mxu0 0.0
    %1412 = vmatpush1.msra.mxu0 %v1282
    %1413 = vmatprep.subr.mxu0 0.0
    %1414 = vmatpush1.msra.mxu0 %v1285
    %1415 = vmatprep.subr.mxu0 0.0
    %1416 = vmatpush1.msra.mxu0 %v1288
    %1417 = vmatprep.subr.mxu0 0.0
    %1418 = vmatpush1.msra.mxu0 %v1291
    %1419 = vmatprep.subr.mxu0 0.0
    %1420 = vmatpush1.msra.mxu0 %v1294
    %1421 = vmatprep.subr.mxu0 0.0
    %1422 = vmatpush1.msra.mxu0 %v1297
    %1423 = vmatprep.subr.mxu0 0.0
    %1424 = vmatpush1.msra.mxu0 %v1300
    %1425 = vmatprep.subr.mxu0 0.0
    %1426 = vmatpush1.msra.mxu0 %v1303
    %1427 = vmatprep.subr.mxu0 0.0
    %1428 = vmatpush1.msra.mxu0 %v1306
    %1429 = vmatprep.subr.mxu0 0.0
    %1430 = vmatpush1.msra.mxu0 %v1309
    %1431 = vmatprep.subr.mxu0 0.0
    %1432 = vmatpush1.msra.mxu0 %v1312
    %1433 = vmatprep.subr.mxu0 0.0
    %1434 = vmatpush1.msra.mxu0 0.0
    %1435 = vmatprep.subr.mxu0 0.0
    %1436 = vmatpush1.msra.mxu0 0.0
    %1437 = vmatprep.subr.mxu0 0.0
    %1438 = vmatpush1.msra.mxu0 0.0
    %1439 = vmatprep.subr.mxu0 0.0
    %1440 = vmatpush1.msra.mxu0 0.0
    %1441 = vmatprep.subr.mxu0 0.0
    %1442 = vmatpush1.msra.mxu0 0.0
    %1443 = vmatprep.subr.mxu0 0.0
    %1444 = vmatpush1.msra.mxu0 0.0
    %1445 = vmatprep.subr.mxu0 0.0
    %1446 = vmatpush1.msra.mxu0 0.0
    %1447 = vmatprep.subr.mxu0 0.0
    %1448 = vmatpush1.msra.mxu0 0.0
    %1449 = vmatprep.subr.mxu0 0.0
    %1450 = vmatpush1.msra.mxu0 0.0
    %1451 = vmatprep.subr.mxu0 0.0
    %1452 = vmatpush1.msra.mxu0 0.0
    %1453 = vmatprep.subr.mxu0 0.0
    %1454 = vmatpush1.msra.mxu0 0.0
    %1455 = vmatprep.subr.mxu0 0.0
    %1456 = vmatpush1.msra.mxu0 0.0
    %1457 = vmatprep.subr.mxu0 0.0
    %1458 = vmatpush1.msra.mxu0 0.0
    %1459 = vmatprep.subr.mxu0 0.0
    %1460 = vmatpush1.msra.mxu0 0.0
    %1461 = vmatprep.subr.mxu0 0.0
    %1462 = vmatpush1.msra.mxu0 0.0
    %1463 = vmatprep.subr.mxu0 0.0
    %1464 = vmatpush1.msra.mxu0 0.0
    %1465 = vmatprep.mubr.f32.mxu0 0.0
    %1466 = vmatmul.mubr.f32.gmra.mrb[0].mxu0 %v1261
    %v1467 = vpop.f32.mrb[0].mxu0
    %v1468 = vadd.f32 %v1326, %v1467
    %v1469 = vpop.f32.mrb[0].mxu0
    %1470 = vdwg.mxu0
    %v1471 = vadd.f32 %v1264, %v1397
    %v1472 = vxor.u32 %v1471, 2147483648
    %v1473 = vmul.f32 %v1472, 1.442695
    %v1474 = vpow.pop %v1473
    %v1475 = vadd.f32 %v1474, 1.0
    %v1476 = vrcp.pop %v1475
    %v1477 = vmul.f32 1.0, %v1476
    %v1479 = vrot.slane %v1264, 1
    %v1481 = vadd.f32 %v1479, %v1399
    %v1482 = vxor.u32 %v1481, 2147483648
    %v1483 = vmul.f32 %v1482, 1.442695
    %v1484 = vpow.pop %v1483
    %v1485 = vadd.f32 %v1484, 1.0
    %v1486 = vrcp.pop %v1485
    %v1487 = vmul.f32 1.0, %v1486
    %v1488 = vmul.f32 %v1477, %v1468
    %v1489 = vrot.slane %v1264, 2
    %v1491 = vadd.f32 %v1489, %v1488
    %v1492 = vtanh.pop %v1491
    %v1493 = vsub.f32 1.0, %v1487
    %v1494 = vmul.f32 %v1493, %v1492
    %v1495 = vmul.f32 %v1487, %v1261
    %v1496 = vadd.f32 %v1494, %v1495
    %1497 = vst [vmem:[#allocation12 + $0x4] sm:$0x1] %v1496
    %s1498 = scalar_lea.vmem [#allocation3], 5
    %v1499 = vld [vmem:[%s1498] ss:$8 sm:$0x7]
    %v1500 = vld [vmem:[#allocation11] sm:$0xff]
    %v1501 = vld [vmem:[#allocation11 + $0x8] sm:$0xff]
    %v1502 = vld [vmem:[#allocation11 + $0x10] sm:$0xff]
    %v1503 = vld [vmem:[#allocation11 + $0x18] sm:$0xff]
    %v1504 = vld [vmem:[#allocation11 + $0x20] sm:$0xff]
    %v1505 = vld [vmem:[#allocation11 + $0x28] sm:$0xff]
    %v1506 = vld [vmem:[#allocation11 + $0x30] sm:$0xff]
    %v1507 = vld [vmem:[#allocation11 + $0x38] sm:$0xff]
    %v1508 = vld [vmem:[#allocation11 + $0x40] sm:$0xff]
    %v1509 = vld [vmem:[#allocation11 + $0x48] sm:$0xff]
    %v1510 = vld [vmem:[#allocation11 + $0x50] sm:$0xff]
    %v1511 = vld [vmem:[#allocation11 + $0x58] sm:$0xff]
    %v1512 = vld [vmem:[#allocation11 + $0x60] sm:$0xff]
    %v1513 = vld [vmem:[#allocation11 + $0x68] sm:$0xff]
    %v1514 = vld [vmem:[#allocation11 + $0x70] sm:$0xff]
    %v1515 = vld [vmem:[#allocation11 + $0x78] sm:$0xff]
    %v1516 = vld [vmem:[#allocation11 + $0x80] sm:$0xff]
    %v1517 = vld [vmem:[#allocation11 + $0x88] sm:$0xff]
    %v1518 = vld [vmem:[#allocation11 + $0x90] sm:$0xff]
    %v1519 = vld [vmem:[#allocation11 + $0x98] sm:$0xff]
    %v1520 = vld [vmem:[#allocation11 + $0xa0] sm:$0xff]
    %v1521 = vld [vmem:[#allocation11 + $0xa8] sm:$0xff]
    %v1522 = vld [vmem:[#allocation11 + $0xb0] sm:$0xff]
    %v1523 = vld [vmem:[#allocation11 + $0xb8] sm:$0xff]
    %v1524 = vld [vmem:[#allocation11 + $0xc0] sm:$0xff]
    %v1525 = vld [vmem:[#allocation11 + $0xc8] sm:$0xff]
    %v1526 = vld [vmem:[#allocation11 + $0xd0] sm:$0xff]
    %v1527 = vld [vmem:[#allocation11 + $0xd8] sm:$0xff]
    %v1528 = vld [vmem:[#allocation11 + $0xe0] sm:$0xff]
    %v1529 = vld [vmem:[#allocation11 + $0xe8] sm:$0xff]
    %v1530 = vld [vmem:[#allocation11 + $0xf0] sm:$0xff]
    %v1531 = vld [vmem:[#allocation11 + $0xf8] sm:$0xff]
    %v1532 = vld [vmem:[#allocation11 + $0x100] sm:$0xff]
    %v1533 = vld [vmem:[#allocation11 + $0x108] sm:$0xff]
    %v1534 = vld [vmem:[#allocation11 + $0x110] sm:$0xff]
    %v1535 = vld [vmem:[#allocation11 + $0x118] sm:$0xff]
    %v1536 = vld [vmem:[#allocation11 + $0x120] sm:$0xff]
    %v1537 = vld [vmem:[#allocation11 + $0x128] sm:$0xff]
    %v1538 = vld [vmem:[#allocation11 + $0x130] sm:$0xff]
    %v1539 = vld [vmem:[#allocation11 + $0x138] sm:$0xff]
    %v1540 = vld [vmem:[#allocation11 + $0x140] sm:$0xff]
    %v1541 = vld [vmem:[#allocation11 + $0x148] sm:$0xff]
    %v1542 = vld [vmem:[#allocation11 + $0x150] sm:$0xff]
    %v1543 = vld [vmem:[#allocation11 + $0x158] sm:$0xff]
    %v1544 = vld [vmem:[#allocation11 + $0x160] sm:$0xff]
    %v1545 = vld [vmem:[#allocation11 + $0x168] sm:$0xff]
    %v1546 = vld [vmem:[#allocation11 + $0x170] sm:$0xff]
    %v1547 = vld [vmem:[#allocation11 + $0x178] sm:$0xff]
    %v1548 = vld [vmem:[%s6] sm:$0x7]
    %v1550 = vlaneseq
    %v1551 = vshrl.u32 %v1550, 7
    %v1552 = vsub.s32 0, %v1551
    %v1553 = vrot.slane %v1548, %v1552
    %v1554 = vlaneseq
    %v1555 = vshrl.u32 %v1554, 7
    %v1556 = vsub.s32 1, %v1555
    %v1557 = vrot.slane %v1548, %v1556
    %v1558 = vlaneseq
    %v1559 = vshrl.u32 %v1558, 7
    %v1560 = vsub.s32 2, %v1559
    %v1561 = vrot.slane %v1548, %v1560
    %1565 = vmatprep.subr.mxu0 %v1501
    %1566 = vmatpush1.msra.mxu0 %v1500
    %1567 = vmatprep.subr.mxu0 %v1504
    %1568 = vmatpush1.msra.mxu0 %v1503
    %1569 = vmatprep.subr.mxu0 %v1507
    %1570 = vmatpush1.msra.mxu0 %v1506
    %1571 = vmatprep.subr.mxu0 %v1510
    %1572 = vmatpush1.msra.mxu0 %v1509
    %1573 = vmatprep.subr.mxu0 %v1513
    %1574 = vmatpush1.msra.mxu0 %v1512
    %1575 = vmatprep.subr.mxu0 %v1516
    %1576 = vmatpush1.msra.mxu0 %v1515
    %1577 = vmatprep.subr.mxu0 %v1519
    %1578 = vmatpush1.msra.mxu0 %v1518
    %1579 = vmatprep.subr.mxu0 %v1522
    %1580 = vmatpush1.msra.mxu0 %v1521
    %1581 = vmatprep.subr.mxu0 %v1525
    %1582 = vmatpush1.msra.mxu0 %v1524
    %1583 = vmatprep.subr.mxu0 %v1528
    %1584 = vmatpush1.msra.mxu0 %v1527
    %1585 = vmatprep.subr.mxu0 %v1531
    %1586 = vmatpush1.msra.mxu0 %v1530
    %1587 = vmatprep.subr.mxu0 %v1534
    %1588 = vmatpush1.msra.mxu0 %v1533
    %1589 = vmatprep.subr.mxu0 %v1537
    %1590 = vmatpush1.msra.mxu0 %v1536
    %1591 = vmatprep.subr.mxu0 %v1540
    %1592 = vmatpush1.msra.mxu0 %v1539
    %1593 = vmatprep.subr.mxu0 %v1543
    %1594 = vmatpush1.msra.mxu0 %v1542
    %1595 = vmatprep.subr.mxu0 %v1546
    %1596 = vmatpush1.msra.mxu0 %v1545
    %1597 = vmatprep.subr.mxu0 0.0
    %1598 = vmatpush1.msra.mxu0 0.0
    %1599 = vmatprep.subr.mxu0 0.0
    %1600 = vmatpush1.msra.mxu0 0.0
    %1601 = vmatprep.subr.mxu0 0.0
    %1602 = vmatpush1.msra.mxu0 0.0
    %1603 = vmatprep.subr.mxu0 0.0
    %1604 = vmatpush1.msra.mxu0 0.0
    %1605 = vmatprep.subr.mxu0 0.0
    %1606 = vmatpush1.msra.mxu0 0.0
    %1607 = vmatprep.subr.mxu0 0.0
    %1608 = vmatpush1.msra.mxu0 0.0
    %1609 = vmatprep.subr.mxu0 0.0
    %1610 = vmatpush1.msra.mxu0 0.0
    %1611 = vmatprep.subr.mxu0 0.0
    %1612 = vmatpush1.msra.mxu0 0.0
    %1613 = vmatprep.subr.mxu0 0.0
    %1614 = vmatpush1.msra.mxu0 0.0
    %1615 = vmatprep.subr.mxu0 0.0
    %1616 = vmatpush1.msra.mxu0 0.0
    %1617 = vmatprep.subr.mxu0 0.0
    %1618 = vmatpush1.msra.mxu0 0.0
    %1619 = vmatprep.subr.mxu0 0.0
    %1620 = vmatpush1.msra.mxu0 0.0
    %1621 = vmatprep.subr.mxu0 0.0
    %1622 = vmatpush1.msra.mxu0 0.0
    %1623 = vmatprep.subr.mxu0 0.0
    %1624 = vmatpush1.msra.mxu0 0.0
    %1625 = vmatprep.subr.mxu0 0.0
    %1626 = vmatpush1.msra.mxu0 0.0
    %1627 = vmatprep.subr.mxu0 0.0
    %1628 = vmatpush1.msra.mxu0 0.0
    %1629 = vmatprep.mubr.f32.mxu0 0.0
    %1630 = vmatmul.mubr.f32.gmra.mrb[0].mxu0 %v1496
    %v1631 = vpop.f32.mrb[0].mxu0
    %v1632 = vadd.f32 %v1553, %v1631
    %v1633 = vpop.f32.mrb[0].mxu0
    %v1634 = vadd.f32 %v1557, %v1633
    %1635 = vdwg.mxu0
    %1636 = vmatprep.subr.mxu0 0.0
    %1637 = vmatpush1.msra.mxu0 %v1502
    %1638 = vmatprep.subr.mxu0 0.0
    %1639 = vmatpush1.msra.mxu0 %v1505
    %1640 = vmatprep.subr.mxu0 0.0
    %1641 = vmatpush1.msra.mxu0 %v1508
    %1642 = vmatprep.subr.mxu0 0.0
    %1643 = vmatpush1.msra.mxu0 %v1511
    %1644 = vmatprep.subr.mxu0 0.0
    %1645 = vmatpush1.msra.mxu0 %v1514
    %1646 = vmatprep.subr.mxu0 0.0
    %1647 = vmatpush1.msra.mxu0 %v1517
    %1648 = vmatprep.subr.mxu0 0.0
    %1649 = vmatpush1.msra.mxu0 %v1520
    %1650 = vmatprep.subr.mxu0 0.0
    %1651 = vmatpush1.msra.mxu0 %v1523
    %1652 = vmatprep.subr.mxu0 0.0
    %1653 = vmatpush1.msra.mxu0 %v1526
    %1654 = vmatprep.subr.mxu0 0.0
    %1655 = vmatpush1.msra.mxu0 %v1529
    %1656 = vmatprep.subr.mxu0 0.0
    %1657 = vmatpush1.msra.mxu0 %v1532
    %1658 = vmatprep.subr.mxu0 0.0
    %1659 = vmatpush1.msra.mxu0 %v1535
    %1660 = vmatprep.subr.mxu0 0.0
    %1661 = vmatpush1.msra.mxu0 %v1538
    %1662 = vmatprep.subr.mxu0 0.0
    %1663 = vmatpush1.msra.mxu0 %v1541
    %1664 = vmatprep.subr.mxu0 0.0
    %1665 = vmatpush1.msra.mxu0 %v1544
    %1666 = vmatprep.subr.mxu0 0.0
    %1667 = vmatpush1.msra.mxu0 %v1547
    %1668 = vmatprep.subr.mxu0 0.0
    %1669 = vmatpush1.msra.mxu0 0.0
    %1670 = vmatprep.subr.mxu0 0.0
    %1671 = vmatpush1.msra.mxu0 0.0
    %1672 = vmatprep.subr.mxu0 0.0
    %1673 = vmatpush1.msra.mxu0 0.0
    %1674 = vmatprep.subr.mxu0 0.0
    %1675 = vmatpush1.msra.mxu0 0.0
    %1676 = vmatprep.subr.mxu0 0.0
    %1677 = vmatpush1.msra.mxu0 0.0
    %1678 = vmatprep.subr.mxu0 0.0
    %1679 = vmatpush1.msra.mxu0 0.0
    %1680 = vmatprep.subr.mxu0 0.0
    %1681 = vmatpush1.msra.mxu0 0.0
    %1682 = vmatprep.subr.mxu0 0.0
    %1683 = vmatpush1.msra.mxu0 0.0
    %1684 = vmatprep.subr.mxu0 0.0
    %1685 = vmatpush1.msra.mxu0 0.0
    %1686 = vmatprep.subr.mxu0 0.0
    %1687 = vmatpush1.msra.mxu0 0.0
    %1688 = vmatprep.subr.mxu0 0.0
    %1689 = vmatpush1.msra.mxu0 0.0
    %1690 = vmatprep.subr.mxu0 0.0
    %1691 = vmatpush1.msra.mxu0 0.0
    %1692 = vmatprep.subr.mxu0 0.0
    %1693 = vmatpush1.msra.mxu0 0.0
    %1694 = vmatprep.subr.mxu0 0.0
    %1695 = vmatpush1.msra.mxu0 0.0
    %1696 = vmatprep.subr.mxu0 0.0
    %1697 = vmatpush1.msra.mxu0 0.0
    %1698 = vmatprep.subr.mxu0 0.0
    %1699 = vmatpush1.msra.mxu0 0.0
    %1700 = vmatprep.mubr.f32.mxu0 0.0
    %1701 = vmatmul.mubr.f32.gmra.mrb[0].mxu0 %v1496
    %v1702 = vpop.f32.mrb[0].mxu0
    %v1703 = vadd.f32 %v1561, %v1702
    %v1704 = vpop.f32.mrb[0].mxu0
    %1705 = vdwg.mxu0
    %v1706 = vadd.f32 %v1499, %v1632
    %v1707 = vxor.u32 %v1706, 2147483648
    %v1708 = vmul.f32 %v1707, 1.442695
    %v1709 = vpow.pop %v1708
    %v1710 = vadd.f32 %v1709, 1.0
    %v1711 = vrcp.pop %v1710
    %v1712 = vmul.f32 1.0, %v1711
    %v1714 = vrot.slane %v1499, 1
    %v1716 = vadd.f32 %v1714, %v1634
    %v1717 = vxor.u32 %v1716, 2147483648
    %v1718 = vmul.f32 %v1717, 1.442695
    %v1719 = vpow.pop %v1718
    %v1720 = vadd.f32 %v1719, 1.0
    %v1721 = vrcp.pop %v1720
    %v1722 = vmul.f32 1.0, %v1721
    %v1723 = vmul.f32 %v1712, %v1703
    %v1724 = vrot.slane %v1499, 2
    %v1726 = vadd.f32 %v1724, %v1723
    %v1727 = vtanh.pop %v1726
    %v1728 = vsub.f32 1.0, %v1722
    %v1729 = vmul.f32 %v1728, %v1727
    %v1730 = vmul.f32 %v1722, %v1496
    %v1731 = vadd.f32 %v1729, %v1730
    %1732 = vst [vmem:[#allocation12 + $0x5] sm:$0x1] %v1731
    %s1733 = scalar_lea.vmem [#allocation3], 6
    %v1734 = vld [vmem:[%s1733] ss:$8 sm:$0x7]
    %v1735 = vld [vmem:[#allocation11] sm:$0xff]
    %v1736 = vld [vmem:[#allocation11 + $0x8] sm:$0xff]
    %v1737 = vld [vmem:[#allocation11 + $0x10] sm:$0xff]
    %v1738 = vld [vmem:[#allocation11 + $0x18] sm:$0xff]
    %v1739 = vld [vmem:[#allocation11 + $0x20] sm:$0xff]
    %v1740 = vld [vmem:[#allocation11 + $0x28] sm:$0xff]
    %v1741 = vld [vmem:[#allocation11 + $0x30] sm:$0xff]
    %v1742 = vld [vmem:[#allocation11 + $0x38] sm:$0xff]
    %v1743 = vld [vmem:[#allocation11 + $0x40] sm:$0xff]
    %v1744 = vld [vmem:[#allocation11 + $0x48] sm:$0xff]
    %v1745 = vld [vmem:[#allocation11 + $0x50] sm:$0xff]
    %v1746 = vld [vmem:[#allocation11 + $0x58] sm:$0xff]
    %v1747 = vld [vmem:[#allocation11 + $0x60] sm:$0xff]
    %v1748 = vld [vmem:[#allocation11 + $0x68] sm:$0xff]
    %v1749 = vld [vmem:[#allocation11 + $0x70] sm:$0xff]
    %v1750 = vld [vmem:[#allocation11 + $0x78] sm:$0xff]
    %v1751 = vld [vmem:[#allocation11 + $0x80] sm:$0xff]
    %v1752 = vld [vmem:[#allocation11 + $0x88] sm:$0xff]
    %v1753 = vld [vmem:[#allocation11 + $0x90] sm:$0xff]
    %v1754 = vld [vmem:[#allocation11 + $0x98] sm:$0xff]
    %v1755 = vld [vmem:[#allocation11 + $0xa0] sm:$0xff]
    %v1756 = vld [vmem:[#allocation11 + $0xa8] sm:$0xff]
    %v1757 = vld [vmem:[#allocation11 + $0xb0] sm:$0xff]
    %v1758 = vld [vmem:[#allocation11 + $0xb8] sm:$0xff]
    %v1759 = vld [vmem:[#allocation11 + $0xc0] sm:$0xff]
    %v1760 = vld [vmem:[#allocation11 + $0xc8] sm:$0xff]
    %v1761 = vld [vmem:[#allocation11 + $0xd0] sm:$0xff]
    %v1762 = vld [vmem:[#allocation11 + $0xd8] sm:$0xff]
    %v1763 = vld [vmem:[#allocation11 + $0xe0] sm:$0xff]
    %v1764 = vld [vmem:[#allocation11 + $0xe8] sm:$0xff]
    %v1765 = vld [vmem:[#allocation11 + $0xf0] sm:$0xff]
    %v1766 = vld [vmem:[#allocation11 + $0xf8] sm:$0xff]
    %v1767 = vld [vmem:[#allocation11 + $0x100] sm:$0xff]
    %v1768 = vld [vmem:[#allocation11 + $0x108] sm:$0xff]
    %v1769 = vld [vmem:[#allocation11 + $0x110] sm:$0xff]
    %v1770 = vld [vmem:[#allocation11 + $0x118] sm:$0xff]
    %v1771 = vld [vmem:[#allocation11 + $0x120] sm:$0xff]
    %v1772 = vld [vmem:[#allocation11 + $0x128] sm:$0xff]
    %v1773 = vld [vmem:[#allocation11 + $0x130] sm:$0xff]
    %v1774 = vld [vmem:[#allocation11 + $0x138] sm:$0xff]
    %v1775 = vld [vmem:[#allocation11 + $0x140] sm:$0xff]
    %v1776 = vld [vmem:[#allocation11 + $0x148] sm:$0xff]
    %v1777 = vld [vmem:[#allocation11 + $0x150] sm:$0xff]
    %v1778 = vld [vmem:[#allocation11 + $0x158] sm:$0xff]
    %v1779 = vld [vmem:[#allocation11 + $0x160] sm:$0xff]
    %v1780 = vld [vmem:[#allocation11 + $0x168] sm:$0xff]
    %v1781 = vld [vmem:[#allocation11 + $0x170] sm:$0xff]
    %v1782 = vld [vmem:[#allocation11 + $0x178] sm:$0xff]
    %v1783 = vld [vmem:[%s6] sm:$0x7]
    %v1785 = vlaneseq
    %v1786 = vshrl.u32 %v1785, 7
    %v1787 = vsub.s32 0, %v1786
    %v1788 = vrot.slane %v1783, %v1787
    %v1789 = vlaneseq
    %v1790 = vshrl.u32 %v1789, 7
    %v1791 = vsub.s32 1, %v1790
    %v1792 = vrot.slane %v1783, %v1791
    %v1793 = vlaneseq
    %v1794 = vshrl.u32 %v1793, 7
    %v1795 = vsub.s32 2, %v1794
    %v1796 = vrot.slane %v1783, %v1795
    %1800 = vmatprep.subr.mxu0 %v1736
    %1801 = vmatpush1.msra.mxu0 %v1735
    %1802 = vmatprep.subr.mxu0 %v1739
    %1803 = vmatpush1.msra.mxu0 %v1738
    %1804 = vmatprep.subr.mxu0 %v1742
    %1805 = vmatpush1.msra.mxu0 %v1741
    %1806 = vmatprep.subr.mxu0 %v1745
    %1807 = vmatpush1.msra.mxu0 %v1744
    %1808 = vmatprep.subr.mxu0 %v1748
    %1809 = vmatpush1.msra.mxu0 %v1747
    %1810 = vmatprep.subr.mxu0 %v1751
    %1811 = vmatpush1.msra.mxu0 %v1750
    %1812 = vmatprep.subr.mxu0 %v1754
    %1813 = vmatpush1.msra.mxu0 %v1753
    %1814 = vmatprep.subr.mxu0 %v1757
    %1815 = vmatpush1.msra.mxu0 %v1756
    %1816 = vmatprep.subr.mxu0 %v1760
    %1817 = vmatpush1.msra.mxu0 %v1759
    %1818 = vmatprep.subr.mxu0 %v1763
    %1819 = vmatpush1.msra.mxu0 %v1762
    %1820 = vmatprep.subr.mxu0 %v1766
    %1821 = vmatpush1.msra.mxu0 %v1765
    %1822 = vmatprep.subr.mxu0 %v1769
    %1823 = vmatpush1.msra.mxu0 %v1768
    %1824 = vmatprep.subr.mxu0 %v1772
    %1825 = vmatpush1.msra.mxu0 %v1771
    %1826 = vmatprep.subr.mxu0 %v1775
    %1827 = vmatpush1.msra.mxu0 %v1774
    %1828 = vmatprep.subr.mxu0 %v1778
    %1829 = vmatpush1.msra.mxu0 %v1777
    %1830 = vmatprep.subr.mxu0 %v1781
    %1831 = vmatpush1.msra.mxu0 %v1780
    %1832 = vmatprep.subr.mxu0 0.0
    %1833 = vmatpush1.msra.mxu0 0.0
    %1834 = vmatprep.subr.mxu0 0.0
    %1835 = vmatpush1.msra.mxu0 0.0
    %1836 = vmatprep.subr.mxu0 0.0
    %1837 = vmatpush1.msra.mxu0 0.0
    %1838 = vmatprep.subr.mxu0 0.0
    %1839 = vmatpush1.msra.mxu0 0.0
    %1840 = vmatprep.subr.mxu0 0.0
    %1841 = vmatpush1.msra.mxu0 0.0
    %1842 = vmatprep.subr.mxu0 0.0
    %1843 = vmatpush1.msra.mxu0 0.0
    %1844 = vmatprep.subr.mxu0 0.0
    %1845 = vmatpush1.msra.mxu0 0.0
    %1846 = vmatprep.subr.mxu0 0.0
    %1847 = vmatpush1.msra.mxu0 0.0
    %1848 = vmatprep.subr.mxu0 0.0
    %1849 = vmatpush1.msra.mxu0 0.0
    %1850 = vmatprep.subr.mxu0 0.0
    %1851 = vmatpush1.msra.mxu0 0.0
    %1852 = vmatprep.subr.mxu0 0.0
    %1853 = vmatpush1.msra.mxu0 0.0
    %1854 = vmatprep.subr.mxu0 0.0
    %1855 = vmatpush1.msra.mxu0 0.0
    %1856 = vmatprep.subr.mxu0 0.0
    %1857 = vmatpush1.msra.mxu0 0.0
    %1858 = vmatprep.subr.mxu0 0.0
    %1859 = vmatpush1.msra.mxu0 0.0
    %1860 = vmatprep.subr.mxu0 0.0
    %1861 = vmatpush1.msra.mxu0 0.0
    %1862 = vmatprep.subr.mxu0 0.0
    %1863 = vmatpush1.msra.mxu0 0.0
    %1864 = vmatprep.mubr.f32.mxu0 0.0
    %1865 = vmatmul.mubr.f32.gmra.mrb[0].mxu0 %v1731
    %v1866 = vpop.f32.mrb[0].mxu0
    %v1867 = vadd.f32 %v1788, %v1866
    %v1868 = vpop.f32.mrb[0].mxu0
    %v1869 = vadd.f32 %v1792, %v1868
    %1870 = vdwg.mxu0
    %1871 = vmatprep.subr.mxu0 0.0
    %1872 = vmatpush1.msra.mxu0 %v1737
    %1873 = vmatprep.subr.mxu0 0.0
    %1874 = vmatpush1.msra.mxu0 %v1740
    %1875 = vmatprep.subr.mxu0 0.0
    %1876 = vmatpush1.msra.mxu0 %v1743
    %1877 = vmatprep.subr.mxu0 0.0
    %1878 = vmatpush1.msra.mxu0 %v1746
    %1879 = vmatprep.subr.mxu0 0.0
    %1880 = vmatpush1.msra.mxu0 %v1749
    %1881 = vmatprep.subr.mxu0 0.0
    %1882 = vmatpush1.msra.mxu0 %v1752
    %1883 = vmatprep.subr.mxu0 0.0
    %1884 = vmatpush1.msra.mxu0 %v1755
    %1885 = vmatprep.subr.mxu0 0.0
    %1886 = vmatpush1.msra.mxu0 %v1758
    %1887 = vmatprep.subr.mxu0 0.0
    %1888 = vmatpush1.msra.mxu0 %v1761
    %1889 = vmatprep.subr.mxu0 0.0
    %1890 = vmatpush1.msra.mxu0 %v1764
    %1891 = vmatprep.subr.mxu0 0.0
    %1892 = vmatpush1.msra.mxu0 %v1767
    %1893 = vmatprep.subr.mxu0 0.0
    %1894 = vmatpush1.msra.mxu0 %v1770
    %1895 = vmatprep.subr.mxu0 0.0
    %1896 = vmatpush1.msra.mxu0 %v1773
    %1897 = vmatprep.subr.mxu0 0.0
    %1898 = vmatpush1.msra.mxu0 %v1776
    %1899 = vmatprep.subr.mxu0 0.0
    %1900 = vmatpush1.msra.mxu0 %v1779
    %1901 = vmatprep.subr.mxu0 0.0
    %1902 = vmatpush1.msra.mxu0 %v1782
    %1903 = vmatprep.subr.mxu0 0.0
    %1904 = vmatpush1.msra.mxu0 0.0
    %1905 = vmatprep.subr.mxu0 0.0
    %1906 = vmatpush1.msra.mxu0 0.0
    %1907 = vmatprep.subr.mxu0 0.0
    %1908 = vmatpush1.msra.mxu0 0.0
    %1909 = vmatprep.subr.mxu0 0.0
    %1910 = vmatpush1.msra.mxu0 0.0
    %1911 = vmatprep.subr.mxu0 0.0
    %1912 = vmatpush1.msra.mxu0 0.0
    %1913 = vmatprep.subr.mxu0 0.0
    %1914 = vmatpush1.msra.mxu0 0.0
    %1915 = vmatprep.subr.mxu0 0.0
    %1916 = vmatpush1.msra.mxu0 0.0
    %1917 = vmatprep.subr.mxu0 0.0
    %1918 = vmatpush1.msra.mxu0 0.0
    %1919 = vmatprep.subr.mxu0 0.0
    %1920 = vmatpush1.msra.mxu0 0.0
    %1921 = vmatprep.subr.mxu0 0.0
    %1922 = vmatpush1.msra.mxu0 0.0
    %1923 = vmatprep.subr.mxu0 0.0
    %1924 = vmatpush1.msra.mxu0 0.0
    %1925 = vmatprep.subr.mxu0 0.0
    %1926 = vmatpush1.msra.mxu0 0.0
    %1927 = vmatprep.subr.mxu0 0.0
    %1928 = vmatpush1.msra.mxu0 0.0
    %1929 = vmatprep.subr.mxu0 0.0
    %1930 = vmatpush1.msra.mxu0 0.0
    %1931 = vmatprep.subr.mxu0 0.0
    %1932 = vmatpush1.msra.mxu0 0.0
    %1933 = vmatprep.subr.mxu0 0.0
    %1934 = vmatpush1.msra.mxu0 0.0
    %1935 = vmatprep.mubr.f32.mxu0 0.0
    %1936 = vmatmul.mubr.f32.gmra.mrb[0].mxu0 %v1731
    %v1937 = vpop.f32.mrb[0].mxu0
    %v1938 = vadd.f32 %v1796, %v1937
    %v1939 = vpop.f32.mrb[0].mxu0
    %1940 = vdwg.mxu0
    %v1941 = vadd.f32 %v1734, %v1867
    %v1942 = vxor.u32 %v1941, 2147483648
    %v1943 = vmul.f32 %v1942, 1.442695
    %v1944 = vpow.pop %v1943
    %v1945 = vadd.f32 %v1944, 1.0
    %v1946 = vrcp.pop %v1945
    %v1947 = vmul.f32 1.0, %v1946
    %v1949 = vrot.slane %v1734, 1
    %v1951 = vadd.f32 %v1949, %v1869
    %v1952 = vxor.u32 %v1951, 2147483648
    %v1953 = vmul.f32 %v1952, 1.442695
    %v1954 = vpow.pop %v1953
    %v1955 = vadd.f32 %v1954, 1.0
    %v1956 = vrcp.pop %v1955
    %v1957 = vmul.f32 1.0, %v1956
    %v1958 = vmul.f32 %v1947, %v1938
    %v1959 = vrot.slane %v1734, 2
    %v1961 = vadd.f32 %v1959, %v1958
    %v1962 = vtanh.pop %v1961
    %v1963 = vsub.f32 1.0, %v1957
    %v1964 = vmul.f32 %v1963, %v1962
    %v1965 = vmul.f32 %v1957, %v1731
    %v1966 = vadd.f32 %v1964, %v1965
    %1967 = vst [vmem:[#allocation12 + $0x6] sm:$0x1] %v1966
    %s1968 = scalar_lea.vmem [#allocation3], 7
    %v1969 = vld [vmem:[%s1968] ss:$8 sm:$0x7]
    %v1970 = vld [vmem:[#allocation11] sm:$0xff]
    %v1971 = vld [vmem:[#allocation11 + $0x8] sm:$0xff]
    %v1972 = vld [vmem:[#allocation11 + $0x10] sm:$0xff]
    %v1973 = vld [vmem:[#allocation11 + $0x18] sm:$0xff]
    %v1974 = vld [vmem:[#allocation11 + $0x20] sm:$0xff]
    %v1975 = vld [vmem:[#allocation11 + $0x28] sm:$0xff]
    %v1976 = vld [vmem:[#allocation11 + $0x30] sm:$0xff]
    %v1977 = vld [vmem:[#allocation11 + $0x38] sm:$0xff]
    %v1978 = vld [vmem:[#allocation11 + $0x40] sm:$0xff]
    %v1979 = vld [vmem:[#allocation11 + $0x48] sm:$0xff]
    %v1980 = vld [vmem:[#allocation11 + $0x50] sm:$0xff]
    %v1981 = vld [vmem:[#allocation11 + $0x58] sm:$0xff]
    %v1982 = vld [vmem:[#allocation11 + $0x60] sm:$0xff]
    %v1983 = vld [vmem:[#allocation11 + $0x68] sm:$0xff]
    %v1984 = vld [vmem:[#allocation11 + $0x70] sm:$0xff]
    %v1985 = vld [vmem:[#allocation11 + $0x78] sm:$0xff]
    %v1986 = vld [vmem:[#allocation11 + $0x80] sm:$0xff]
    %v1987 = vld [vmem:[#allocation11 + $0x88] sm:$0xff]
    %v1988 = vld [vmem:[#allocation11 + $0x90] sm:$0xff]
    %v1989 = vld [vmem:[#allocation11 + $0x98] sm:$0xff]
    %v1990 = vld [vmem:[#allocation11 + $0xa0] sm:$0xff]
    %v1991 = vld [vmem:[#allocation11 + $0xa8] sm:$0xff]
    %v1992 = vld [vmem:[#allocation11 + $0xb0] sm:$0xff]
    %v1993 = vld [vmem:[#allocation11 + $0xb8] sm:$0xff]
    %v1994 = vld [vmem:[#allocation11 + $0xc0] sm:$0xff]
    %v1995 = vld [vmem:[#allocation11 + $0xc8] sm:$0xff]
    %v1996 = vld [vmem:[#allocation11 + $0xd0] sm:$0xff]
    %v1997 = vld [vmem:[#allocation11 + $0xd8] sm:$0xff]
    %v1998 = vld [vmem:[#allocation11 + $0xe0] sm:$0xff]
    %v1999 = vld [vmem:[#allocation11 + $0xe8] sm:$0xff]
    %v2000 = vld [vmem:[#allocation11 + $0xf0] sm:$0xff]
    %v2001 = vld [vmem:[#allocation11 + $0xf8] sm:$0xff]
    %v2002 = vld [vmem:[#allocation11 + $0x100] sm:$0xff]
    %v2003 = vld [vmem:[#allocation11 + $0x108] sm:$0xff]
    %v2004 = vld [vmem:[#allocation11 + $0x110] sm:$0xff]
    %v2005 = vld [vmem:[#allocation11 + $0x118] sm:$0xff]
    %v2006 = vld [vmem:[#allocation11 + $0x120] sm:$0xff]
    %v2007 = vld [vmem:[#allocation11 + $0x128] sm:$0xff]
    %v2008 = vld [vmem:[#allocation11 + $0x130] sm:$0xff]
    %v2009 = vld [vmem:[#allocation11 + $0x138] sm:$0xff]
    %v2010 = vld [vmem:[#allocation11 + $0x140] sm:$0xff]
    %v2011 = vld [vmem:[#allocation11 + $0x148] sm:$0xff]
    %v2012 = vld [vmem:[#allocation11 + $0x150] sm:$0xff]
    %v2013 = vld [vmem:[#allocation11 + $0x158] sm:$0xff]
    %v2014 = vld [vmem:[#allocation11 + $0x160] sm:$0xff]
    %v2015 = vld [vmem:[#allocation11 + $0x168] sm:$0xff]
    %v2016 = vld [vmem:[#allocation11 + $0x170] sm:$0xff]
    %v2017 = vld [vmem:[#allocation11 + $0x178] sm:$0xff]
    %v2018 = vld [vmem:[%s6] sm:$0x7]
    %v2020 = vlaneseq
    %v2021 = vshrl.u32 %v2020, 7
    %v2022 = vsub.s32 0, %v2021
    %v2023 = vrot.slane %v2018, %v2022
    %v2024 = vlaneseq
    %v2025 = vshrl.u32 %v2024, 7
    %v2026 = vsub.s32 1, %v2025
    %v2027 = vrot.slane %v2018, %v2026
    %v2028 = vlaneseq
    %v2029 = vshrl.u32 %v2028, 7
    %v2030 = vsub.s32 2, %v2029
    %v2031 = vrot.slane %v2018, %v2030
    %2035 = vmatprep.subr.mxu0 %v1971
    %2036 = vmatpush1.msra.mxu0 %v1970
    %2037 = vmatprep.subr.mxu0 %v1974
    %2038 = vmatpush1.msra.mxu0 %v1973
    %2039 = vmatprep.subr.mxu0 %v1977
    %2040 = vmatpush1.msra.mxu0 %v1976
    %2041 = vmatprep.subr.mxu0 %v1980
    %2042 = vmatpush1.msra.mxu0 %v1979
    %2043 = vmatprep.subr.mxu0 %v1983
    %2044 = vmatpush1.msra.mxu0 %v1982
    %2045 = vmatprep.subr.mxu0 %v1986
    %2046 = vmatpush1.msra.mxu0 %v1985
    %2047 = vmatprep.subr.mxu0 %v1989
    %2048 = vmatpush1.msra.mxu0 %v1988
    %2049 = vmatprep.subr.mxu0 %v1992
    %2050 = vmatpush1.msra.mxu0 %v1991
    %2051 = vmatprep.subr.mxu0 %v1995
    %2052 = vmatpush1.msra.mxu0 %v1994
    %2053 = vmatprep.subr.mxu0 %v1998
    %2054 = vmatpush1.msra.mxu0 %v1997
    %2055 = vmatprep.subr.mxu0 %v2001
    %2056 = vmatpush1.msra.mxu0 %v2000
    %2057 = vmatprep.subr.mxu0 %v2004
    %2058 = vmatpush1.msra.mxu0 %v2003
    %2059 = vmatprep.subr.mxu0 %v2007
    %2060 = vmatpush1.msra.mxu0 %v2006
    %2061 = vmatprep.subr.mxu0 %v2010
    %2062 = vmatpush1.msra.mxu0 %v2009
    %2063 = vmatprep.subr.mxu0 %v2013
    %2064 = vmatpush1.msra.mxu0 %v2012
    %2065 = vmatprep.subr.mxu0 %v2016
    %2066 = vmatpush1.msra.mxu0 %v2015
    %2067 = vmatprep.subr.mxu0 0.0
    %2068 = vmatpush1.msra.mxu0 0.0
    %2069 = vmatprep.subr.mxu0 0.0
    %2070 = vmatpush1.msra.mxu0 0.0
    %2071 = vmatprep.subr.mxu0 0.0
    %2072 = vmatpush1.msra.mxu0 0.0
    %2073 = vmatprep.subr.mxu0 0.0
    %2074 = vmatpush1.msra.mxu0 0.0
    %2075 = vmatprep.subr.mxu0 0.0
    %2076 = vmatpush1.msra.mxu0 0.0
    %2077 = vmatprep.subr.mxu0 0.0
    %2078 = vmatpush1.msra.mxu0 0.0
    %2079 = vmatprep.subr.mxu0 0.0
    %2080 = vmatpush1.msra.mxu0 0.0
    %2081 = vmatprep.subr.mxu0 0.0
    %2082 = vmatpush1.msra.mxu0 0.0
    %2083 = vmatprep.subr.mxu0 0.0
    %2084 = vmatpush1.msra.mxu0 0.0
    %2085 = vmatprep.subr.mxu0 0.0
    %2086 = vmatpush1.msra.mxu0 0.0
    %2087 = vmatprep.subr.mxu0 0.0
    %2088 = vmatpush1.msra.mxu0 0.0
    %2089 = vmatprep.subr.mxu0 0.0
    %2090 = vmatpush1.msra.mxu0 0.0
    %2091 = vmatprep.subr.mxu0 0.0
    %2092 = vmatpush1.msra.mxu0 0.0
    %2093 = vmatprep.subr.mxu0 0.0
    %2094 = vmatpush1.msra.mxu0 0.0
    %2095 = vmatprep.subr.mxu0 0.0
    %2096 = vmatpush1.msra.mxu0 0.0
    %2097 = vmatprep.subr.mxu0 0.0
    %2098 = vmatpush1.msra.mxu0 0.0
    %2099 = vmatprep.mubr.f32.mxu0 0.0
    %2100 = vmatmul.mubr.f32.gmra.mrb[0].mxu0 %v1966
    %v2101 = vpop.f32.mrb[0].mxu0
    %v2102 = vadd.f32 %v2023, %v2101
    %v2103 = vpop.f32.mrb[0].mxu0
    %v2104 = vadd.f32 %v2027, %v2103
    %2105 = vdwg.mxu0
    %2106 = vmatprep.subr.mxu0 0.0
    %2107 = vmatpush1.msra.mxu0 %v1972
    %2108 = vmatprep.subr.mxu0 0.0
    %2109 = vmatpush1.msra.mxu0 %v1975
    %2110 = vmatprep.subr.mxu0 0.0
    %2111 = vmatpush1.msra.mxu0 %v1978
    %2112 = vmatprep.subr.mxu0 0.0
    %2113 = vmatpush1.msra.mxu0 %v1981
    %2114 = vmatprep.subr.mxu0 0.0
    %2115 = vmatpush1.msra.mxu0 %v1984
    %2116 = vmatprep.subr.mxu0 0.0
    %2117 = vmatpush1.msra.mxu0 %v1987
    %2118 = vmatprep.subr.mxu0 0.0
    %2119 = vmatpush1.msra.mxu0 %v1990
    %2120 = vmatprep.subr.mxu0 0.0
    %2121 = vmatpush1.msra.mxu0 %v1993
    %2122 = vmatprep.subr.mxu0 0.0
    %2123 = vmatpush1.msra.mxu0 %v1996
    %2124 = vmatprep.subr.mxu0 0.0
    %2125 = vmatpush1.msra.mxu0 %v1999
    %2126 = vmatprep.subr.mxu0 0.0
    %2127 = vmatpush1.msra.mxu0 %v2002
    %2128 = vmatprep.subr.mxu0 0.0
    %2129 = vmatpush1.msra.mxu0 %v2005
    %2130 = vmatprep.subr.mxu0 0.0
    %2131 = vmatpush1.msra.mxu0 %v2008
    %2132 = vmatprep.subr.mxu0 0.0
    %2133 = vmatpush1.msra.mxu0 %v2011
    %2134 = vmatprep.subr.mxu0 0.0
    %2135 = vmatpush1.msra.mxu0 %v2014
    %2136 = vmatprep.subr.mxu0 0.0
    %2137 = vmatpush1.msra.mxu0 %v2017
    %2138 = vmatprep.subr.mxu0 0.0
    %2139 = vmatpush1.msra.mxu0 0.0
    %2140 = vmatprep.subr.mxu0 0.0
    %2141 = vmatpush1.msra.mxu0 0.0
    %2142 = vmatprep.subr.mxu0 0.0
    %2143 = vmatpush1.msra.mxu0 0.0
    %2144 = vmatprep.subr.mxu0 0.0
    %2145 = vmatpush1.msra.mxu0 0.0
    %2146 = vmatprep.subr.mxu0 0.0
    %2147 = vmatpush1.msra.mxu0 0.0
    %2148 = vmatprep.subr.mxu0 0.0
    %2149 = vmatpush1.msra.mxu0 0.0
    %2150 = vmatprep.subr.mxu0 0.0
    %2151 = vmatpush1.msra.mxu0 0.0
    %2152 = vmatprep.subr.mxu0 0.0
    %2153 = vmatpush1.msra.mxu0 0.0
    %2154 = vmatprep.subr.mxu0 0.0
    %2155 = vmatpush1.msra.mxu0 0.0
    %2156 = vmatprep.subr.mxu0 0.0
    %2157 = vmatpush1.msra.mxu0 0.0
    %2158 = vmatprep.subr.mxu0 0.0
    %2159 = vmatpush1.msra.mxu0 0.0
    %2160 = vmatprep.subr.mxu0 0.0
    %2161 = vmatpush1.msra.mxu0 0.0
    %2162 = vmatprep.subr.mxu0 0.0
    %2163 = vmatpush1.msra.mxu0 0.0
    %2164 = vmatprep.subr.mxu0 0.0
    %2165 = vmatpush1.msra.mxu0 0.0
    %2166 = vmatprep.subr.mxu0 0.0
    %2167 = vmatpush1.msra.mxu0 0.0
    %2168 = vmatprep.subr.mxu0 0.0
    %2169 = vmatpush1.msra.mxu0 0.0
    %2170 = vmatprep.mubr.f32.mxu0 0.0
    %2171 = vmatmul.mubr.f32.gmra.mrb[0].mxu0 %v1966
    %v2172 = vpop.f32.mrb[0].mxu0
    %v2173 = vadd.f32 %v2031, %v2172
    %v2174 = vpop.f32.mrb[0].mxu0
    %2175 = vdwg.mxu0
    %v2176 = vadd.f32 %v1969, %v2102
    %v2177 = vxor.u32 %v2176, 2147483648
    %v2178 = vmul.f32 %v2177, 1.442695
    %v2179 = vpow.pop %v2178
    %v2180 = vadd.f32 %v2179, 1.0
    %v2181 = vrcp.pop %v2180
    %v2182 = vmul.f32 1.0, %v2181
    %v2184 = vrot.slane %v1969, 1
    %v2186 = vadd.f32 %v2184, %v2104
    %v2187 = vxor.u32 %v2186, 2147483648
    %v2188 = vmul.f32 %v2187, 1.442695
    %v2189 = vpow.pop %v2188
    %v2190 = vadd.f32 %v2189, 1.0
    %v2191 = vrcp.pop %v2190
    %v2192 = vmul.f32 1.0, %v2191
    %v2193 = vmul.f32 %v2182, %v2173
    %v2194 = vrot.slane %v1969, 2
    %v2196 = vadd.f32 %v2194, %v2193
    %v2197 = vtanh.pop %v2196
    %v2198 = vsub.f32 1.0, %v2192
    %v2199 = vmul.f32 %v2198, %v2197
    %v2200 = vmul.f32 %v2192, %v1966
    %v2201 = vadd.f32 %v2199, %v2200
    %2202 = vst [vmem:[#allocation12 + $0x7] sm:$0x1] %v2201
    // Predicated region
    $region46: #{tpu_custom_call.1} parent=1 // pred_check
      _
    $region47: #{tpu_custom_call.1} parent=1 // pred_check_branch
      %2204 = sbr.rel (0) target = $region49
    $region48: #{tpu_custom_call.1} parent=1 // pred_region
      %s2206 = ssub.s32 128, 128
      %2207 = vsyncadd [#allocation6], %s2206
      %s2209 = sshll.u32 [#allocation12], 4
      %s2210 = int_to_ptr.vmem [resolvable:$true] %s2209
      %2212 = dma.vmem_to_hbm [thread:$0]  %s2210, 128, %s7, [#allocation6]
    $region49: #{tpu_custom_call.1} parent=1 // pred_fallthru
      _
    // Predicated region
    $region50: #{tpu_custom_call.1} parent=1 // pred_check
      _
    $region51: #{tpu_custom_call.1} parent=1 // pred_check_branch
      %2214 = sbr.rel (0) target = $region53
    $region52: #{tpu_custom_call.1} parent=1 // pred_region
      %2215 = dma.done [#allocation6], 128
    $region53: #{tpu_custom_call.1} parent=1 // pred_fallthru
      _
    %2216 = vsyncpa [#allocation5], 1
    %2217 = vsyncpa [#allocation10], 1
    %2218 = vsyncpa [#allocation6], 1
    %2219 = vsyncpa [#allocation7], 1

</llo_original>
